<compile_context>
chip_gen: v7x
topology: tpu7x:2x2x1
jax: 0.10.0
libtpu: 0.0.40
codegen_flags: <defaults>
</compile_context>

<pallas_src>
import functools

import jax
import jax.numpy as jnp
from jax.experimental import pallas as pl
from jax.experimental.pallas import tpu as pltpu


# ---------------------------------------------------------------------------
# Kernels
# ---------------------------------------------------------------------------
def _dhpm_test_kernel(nl_uv, xT_ref,
                      wiu, biu, wmu, bmu, wou, bou,
                      wiv, biv, wmv, bmv, wov, bov,
                      out_ref):
    """Fused NN_u / NN_v plain forward.  out rows: [u, v], batch on lanes."""
    f32 = jnp.float32
    xT = xT_ref[...]                                   # [3, Bt]

    def net(wi_r, bi_r, wm_r, bm_r, wo_r, bo_r):
        h = jnp.sin(jnp.dot(wi_r[...], xT, preferred_element_type=f32) + bi_r[...])
        for _ in range(nl_uv - 2):                     # static unroll (1-2 iters)
            h = jnp.sin(jnp.dot(wm_r[...], h, preferred_element_type=f32) + bm_r[...])
        return jnp.dot(wo_r[...], h, preferred_element_type=f32) + bo_r[...]

    dt = out_ref.dtype
    out_ref[0:1, :] = net(wiu, biu, wmu, bmu, wou, bou).astype(dt)
    out_ref[1:2, :] = net(wiv, biv, wmv, bmv, wov, bov).astype(dt)


def _dhpm_train_kernel(nl_uv, nl_f, bt, xT_ref,
                       wiu_ref, biu_ref, wmu_ref, bmu_ref, wou_ref, bou_ref,
                       wiv_ref, biv_ref, wmv_ref, bmv_ref, wov_ref, bov_ref,
                       wif_ref, bif_ref, wmf_ref, bmf_ref, wof_ref, bof_ref,
                       out_ref, hbig_ref):
    """Fused training-mode forward.

    out_ref rows (14, Bt):
      [u, v, u_t, v_t, u_x, u_xx, u_y, u_yy, v_x, v_xx, v_y, v_yy, f_u, f_v]
    hbig_ref: [H, 6*Bt] VMEM scratch holding (h | hx | hy | ht | hxx | hyy)
    so every middle layer and the output layer is a single wide-RHS matmul.
    """
    f32 = jnp.float32
    xT = xT_ref[...]                                   # [3, Bt]

    def deriv_net(wi, bi, wm, bm, wo, bo):
        # ---- input layer: z = Wi x + b (linear in x => d2z = 0) ----------
        z = jnp.dot(wi, xT, preferred_element_type=f32) + bi      # [H, Bt]
        s = jnp.sin(z)
        c = jnp.cos(z)
        # dz/dk is just column k of Wi; keep as [H,1], broadcast lazily.
        zx = wi[:, 0:1]
        zy = wi[:, 1:2]
        zt = wi[:, 2:3]
        hbig_ref[:, 0:bt] = s
        hbig_ref[:, bt:2 * bt] = c * zx
        hbig_ref[:, 2 * bt:3 * bt] = c * zy
        hbig_ref[:, 3 * bt:4 * bt] = c * zt
        hbig_ref[:, 4 * bt:5 * bt] = -s * (zx * zx)
        hbig_ref[:, 5 * bt:6 * bt] = -s * (zy * zy)

        # ---- shared middle layer: one wide matmul per layer --------------
        # TODO(synk): switch to lax.fori_loop over the scratch carry if
        # num_layers grows beyond ~4 (static unroll fine for 1-2 iterations).
        for _ in range(nl_uv - 2):
            Zb = jnp.dot(wm, hbig_ref[...], preferred_element_type=f32)  # [H,6Bt]
            z = Zb[:, 0:bt] + bm
            s = jnp.sin(z)
            c = jnp.cos(z)
            zx = Zb[:, bt:2 * bt]
            zy = Zb[:, 2 * bt:3 * bt]
            zt = Zb[:, 3 * bt:4 * bt]
            zxx = Zb[:, 4 * bt:5 * bt]
            zyy = Zb[:, 5 * bt:6 * bt]
            hbig_ref[:, 0:bt] = s
            hbig_ref[:, bt:2 * bt] = c * zx
            hbig_ref[:, 2 * bt:3 * bt] = c * zy
            hbig_ref[:, 3 * bt:4 * bt] = c * zt
            hbig_ref[:, 4 * bt:5 * bt] = c * zxx - s * (zx * zx)
            hbig_ref[:, 5 * bt:6 * bt] = c * zyy - s * (zy * zy)

        # ---- linear output layer: one matmul over the wide buffer --------
        o = jnp.dot(wo, hbig_ref[...], preferred_element_type=f32)  # [1, 6Bt]
        return (o[:, 0:bt] + bo,            # u
                o[:, bt:2 * bt],            # u_x
                o[:, 2 * bt:3 * bt],        # u_y
                o[:, 3 * bt:4 * bt],        # u_t
                o[:, 4 * bt:5 * bt],        # u_xx
                o[:, 5 * bt:6 * bt])        # u_yy

    dt = out_ref.dtype

    u, ux, uy, ut, uxx, uyy = deriv_net(
        wiu_ref[...], biu_ref[...], wmu_ref[...], bmu_ref[...],
        wou_ref[...], bou_ref[...])
    out_ref[0:1, :] = u.astype(dt)
    out_ref[2:3, :] = ut.astype(dt)
    out_ref[4:5, :] = ux.astype(dt)
    out_ref[5:6, :] = uxx.astype(dt)
    out_ref[6:7, :] = uy.astype(dt)
    out_ref[7:8, :] = uyy.astype(dt)

    v, vx, vy, vt, vxx, vyy = deriv_net(
        wiv_ref[...], biv_ref[...], wmv_ref[...], bmv_ref[...],
        wov_ref[...], bov_ref[...])
    out_ref[1:2, :] = v.astype(dt)
    out_ref[3:4, :] = vt.astype(dt)
    out_ref[8:9, :] = vx.astype(dt)
    out_ref[9:10, :] = vxx.astype(dt)
    out_ref[10:11, :] = vy.astype(dt)
    out_ref[11:12, :] = vyy.astype(dt)

    # NN_f consumes the 12-row feature block already sitting in out_ref[0:12].
    feat = out_ref[0:12, :].astype(f32)                # [12, Bt]
    hf = jnp.sin(jnp.dot(wif_ref[...], feat, preferred_element_type=f32)
                 + bif_ref[...])
    for _ in range(nl_f - 2):
        hf = jnp.sin(jnp.dot(wmf_ref[...], hf, preferred_element_type=f32)
                     + bmf_ref[...])
    fo = jnp.dot(wof_ref[...], hf, preferred_element_type=f32) + bof_ref[...]
    out_ref[12:14, :] = fo.astype(dt)                  # [2, Bt] -> f_u, f_v


# ---------------------------------------------------------------------------
# Wrappers
# ---------------------------------------------------------------------------
def _pick_batch_tile(batch, hidden, batch_tile=None):
    """Lane-dense batch tile that fits the scoped-VMEM activation budget and
    keeps >=2 grid points when possible (so v7x's 2 TensorCores both work)."""
    if batch_tile is not None:
        assert batch % batch_tile == 0
        assert batch_tile == batch or batch_tile % 128 == 0
        return batch_tile
    if batch % 128 != 0:
        return batch                          # tiny/odd batch: single full tile
    # live activations ~ Hbig + Z + s/c/misc ~= 16 * H * Bt f32 = 64*H*Bt bytes
    budget = 12 * 1024 * 1024                 # leave room in the 32 MiB scoped VMEM
    per_col = 64 * max(hidden, 32)
    cap = max(128, (budget // per_col) // 128 * 128)
    bt = min(batch, cap)
    while batch % bt:
        bt -= 128
    if bt == batch and batch >= 256 and (batch // 2) % 128 == 0:
        bt = batch // 2                       # at least 2 grid points (megacore)
    return bt


def _param_specs(h, din, dout):
    c = lambda i: (0, 0)                      # weights resident across batch tiles
    return [pl.BlockSpec((h, din), c), pl.BlockSpec((h, 1), c),
            pl.BlockSpec((h, h), c), pl.BlockSpec((h, 1), c),
            pl.BlockSpec((dout, h), c), pl.BlockSpec((dout, 1), c)]


def _flat(params):
    wi, bi, wm, bm, wo, bo = params
    return [wi, bi.reshape(-1, 1), wm, bm.reshape(-1, 1), wo, bo.reshape(-1, 1)]


def dhpm_forward(inputs, params_u, params_v, params_f,
                 num_layers=(3, 3), *, test=False, batch_tile=None):
    """Pallas version of DHPM.forward.

    inputs: [batch, 3] columns (x, y, t).
    test=True  -> (u, v)
    test=False -> (u, v, u_t, v_t, u_x, u_xx, u_y, u_yy, v_x, v_xx, v_y, v_yy,
                   f_u, f_v), each [batch, 1].
    """
    nl_uv, nl_f = num_layers
    hu = params_u[0].shape[0]
    hf = params_f[0].shape[0]
    dtype = inputs.dtype

    xT = inputs.T                             # [3, B]  (layout plumbing only)
    b0 = xT.shape[1]
    pad = (-b0) % 128
    if pad:
        xT = jnp.pad(xT, ((0, 0), (0, pad)))  # lane-dense batch
    batch = xT.shape[1]
    bt = _pick_batch_tile(batch, hu, batch_tile)
    grid = (batch // bt,)
    cparams = pltpu.CompilerParams(
        dimension_semantics=("parallel",),
        vmem_limit_bytes=32 * 1024 * 1024)    # raises v5e's 16 MiB default; safe on v7x

    if test:
        out = pl.pallas_call(
            functools.partial(_dhpm_test_kernel, nl_uv),
            out_shape=jax.ShapeDtypeStruct((2, batch), dtype),
            grid=grid,
            in_specs=([pl.BlockSpec((3, bt), lambda i: (0, i))]
                      + _param_specs(hu, 3, 1) + _param_specs(hu, 3, 1)),
            out_specs=pl.BlockSpec((2, bt), lambda i: (0, i)),
            compiler_params=cparams,
        )(xT, *_flat(params_u), *_flat(params_v))
        uv = out[:, :b0].T                    # single transpose
        return uv[:, 0:1], uv[:, 1:2]

    out = pl.pallas_call(
        functools.partial(_dhpm_train_kernel, nl_uv, nl_f, bt),
        out_shape=jax.ShapeDtypeStruct((14, batch), dtype),
        grid=grid,
        in_specs=([pl.BlockSpec((3, bt), lambda i: (0, i))]
                  + _param_specs(hu, 3, 1) + _param_specs(hu, 3, 1)
                  + _param_specs(hf, 12, 2)),
        out_specs=pl.BlockSpec((14, bt), lambda i: (0, i)),
        scratch_shapes=[pltpu.VMEM((hu, 6 * bt), jnp.float32)],
        compiler_params=cparams,
    )(xT, *_flat(params_u), *_flat(params_v), *_flat(params_f))

    res = out[:, :b0].T                       # [B, 14] -- one transpose total
    return tuple(res[:, k:k + 1] for k in range(14))


# ---------------------------------------------------------------------------
# Parameters & pure-JAX reference (derivatives via jax.jvp == autograd.grad)
# ---------------------------------------------------------------------------
def init_params(key, input_dim, hidden_dim, output_dim, dtype=jnp.float32):
    """nn.Linear-style init; weights kept in PyTorch layout [out, in]."""
    keys = jax.random.split(key, 6)

    def lin(kw, kb, fan_in, fan_out):
        bound = 1.0 / jnp.sqrt(jnp.asarray(fan_in, dtype))
        w = jax.random.uniform(kw, (fan_out, fan_in), dtype, -bound, bound)
        b = jax.random.uniform(kb, (fan_out,), dtype, -bound, bound)
        return w, b

    wi, bi = lin(keys[0], keys[1], input_dim, hidden_dim)
    wm, bm = lin(keys[2], keys[3], hidden_dim, hidden_dim)
    wo, bo = lin(keys[4], keys[5], hidden_dim, output_dim)
    return wi, bi, wm, bm, wo, bo


def nn_ref(x, params, num_layers):
    wi, bi, wm, bm, wo, bo = params
    h = jnp.sin(x @ wi.T + bi)
    for _ in range(num_layers - 2):
        h = jnp.sin(h @ wm.T + bm)
    return h @ wo.T + bo


def nn_ref_derivs(x, params, num_layers):
    f = lambda xin: nn_ref(xin, params, num_layers)

    def partials(k):
        tangent = jnp.zeros_like(x).at[:, k].set(1.0)
        g = lambda xin: jax.jvp(f, (xin,), (tangent,))[1]
        d1 = g(x)
        d2 = jax.jvp(g, (x,), (tangent,))[1]
        return d1, d2

    u = f(x)
    ux, uxx = partials(0)
    uy, uyy = partials(1)
    ut, _ = partials(2)
    return u, ux, uy, ut, uxx, uyy


def dhpm_forward_ref(inputs, params_u, params_v, params_f, num_layers):
    nl_uv, nl_f = num_layers
    u, ux, uy, ut, uxx, uyy = nn_ref_derivs(inputs, params_u, nl_uv)
    v, vx, vy, vt, vxx, vyy = nn_ref_derivs(inputs, params_v, nl_uv)
    feat = jnp.concatenate(
        [u, v, ut, vt, ux, uxx, uy, uyy, vx, vxx, vy, vyy], axis=1)
    f = nn_ref(feat, params_f, nl_f)
    return (u, v, ut, vt, ux, uxx, uy, uyy, vx, vxx, vy, vyy,
            f[:, :1], f[:, 1:])


if __name__ == "__main__":
    # Small DHPM: batch is a lane-dense multiple of 128 (split into 2 tiles so
    # both v7x TensorCores engage); hidden dims are sublane-friendly (the real
    # model's hidden=200 also is a multiple of 8).
    batch = 256
    hidden_dim = (32, 32)
    num_layers = (3, 3)

    key = jax.random.PRNGKey(0)
    k_in, k_u, k_v, k_f = jax.random.split(key, 4)
    inputs = jax.random.normal(k_in, (batch, 3), jnp.float32)
    params_u = init_params(k_u, 3, hidden_dim[0], 1)
    params_v = init_params(k_v, 3, hidden_dim[0], 1)
    params_f = init_params(k_f, 12, hidden_dim[1], 2)

    # test-mode forward (u, v only) -- one fused pallas_call
    u_test, v_test = dhpm_forward(inputs, params_u, params_v, params_f,
                                  num_layers, test=True)
    # full training-mode forward (u, v, derivatives, f_u, f_v) -- one pallas_call
    outs = dhpm_forward(inputs, params_u, params_v, params_f,
                        num_layers, test=False)
    outs = jax.block_until_ready(outs)

    refs = dhpm_forward_ref(inputs, params_u, params_v, params_f, num_layers)
    names = ["u", "v", "u_t", "v_t", "u_x", "u_xx", "u_y", "u_yy",
             "v_x", "v_xx", "v_y", "v_yy", "f_u", "f_v"]
    for name, got, want in zip(names, outs, refs):
        assert got.shape == want.shape, f"{name}: {got.shape} vs {want.shape}"
        err = float(jnp.max(jnp.abs(got - want)))
        assert jnp.allclose(got, want, atol=5e-4, rtol=5e-4), (
            f"{name} mismatch, max abs err {err}")
    assert jnp.allclose(u_test, refs[0], atol=5e-4, rtol=5e-4), "u (test) mismatch"
    assert jnp.allclose(v_test, refs[1], atol=5e-4, rtol=5e-4), "v (test) mismatch"

    print("KERNEL_OK")
</pallas_src>

<mosaic_0001>
module attributes {stable_mosaic.version = 11 : i64} {
  func.func @_dhpm_test_kernel(%arg0: i32, %arg1: memref<3x128xf32, #tpu.memory_space<vmem>>, %arg2: memref<32x3xf32, #tpu.memory_space<vmem>>, %arg3: memref<32x1xf32, #tpu.memory_space<vmem>>, %arg4: memref<32x32xf32, #tpu.memory_space<vmem>>, %arg5: memref<32x1xf32, #tpu.memory_space<vmem>>, %arg6: memref<1x32xf32, #tpu.memory_space<vmem>>, %arg7: memref<1x1xf32, #tpu.memory_space<vmem>>, %arg8: memref<32x3xf32, #tpu.memory_space<vmem>>, %arg9: memref<32x1xf32, #tpu.memory_space<vmem>>, %arg10: memref<32x32xf32, #tpu.memory_space<vmem>>, %arg11: memref<32x1xf32, #tpu.memory_space<vmem>>, %arg12: memref<1x32xf32, #tpu.memory_space<vmem>>, %arg13: memref<1x1xf32, #tpu.memory_space<vmem>>, %arg14: memref<2x128xf32, #tpu.memory_space<vmem>>) attributes {dimension_semantics = [#tpu.dimension_semantics<parallel>], iteration_bounds = array<i64: 2>, scalar_prefetch = 0 : i64, scratch_operands = 0 : i64, tpu.core_type = #tpu.core_type<tc>, window_params = [{transform_indices = @transform_0, window_bounds = array<i64: 3, 128>}, {pipeline_mode = #tpu.pipeline_mode<synchronous>, transform_indices = @transform_1, window_bounds = array<i64: 32, 3>}, {pipeline_mode = #tpu.pipeline_mode<synchronous>, transform_indices = @transform_2, window_bounds = array<i64: 32, 1>}, {pipeline_mode = #tpu.pipeline_mode<synchronous>, transform_indices = @transform_3, window_bounds = array<i64: 32, 32>}, {pipeline_mode = #tpu.pipeline_mode<synchronous>, transform_indices = @transform_4, window_bounds = array<i64: 32, 1>}, {pipeline_mode = #tpu.pipeline_mode<synchronous>, transform_indices = @transform_5, window_bounds = array<i64: 1, 32>}, {pipeline_mode = #tpu.pipeline_mode<synchronous>, transform_indices = @transform_6, window_bounds = array<i64: 1, 1>}, {pipeline_mode = #tpu.pipeline_mode<synchronous>, transform_indices = @transform_7, window_bounds = array<i64: 32, 3>}, {pipeline_mode = #tpu.pipeline_mode<synchronous>, transform_indices = @transform_8, window_bounds = array<i64: 32, 1>}, {pipeline_mode = #tpu.pipeline_mode<synchronous>, transform_indices = @transform_9, window_bounds = array<i64: 32, 32>}, {pipeline_mode = #tpu.pipeline_mode<synchronous>, transform_indices = @transform_10, window_bounds = array<i64: 32, 1>}, {pipeline_mode = #tpu.pipeline_mode<synchronous>, transform_indices = @transform_11, window_bounds = array<i64: 1, 32>}, {pipeline_mode = #tpu.pipeline_mode<synchronous>, transform_indices = @transform_12, window_bounds = array<i64: 1, 1>}, {transform_indices = @transform_13, window_bounds = array<i64: 2, 128>}]} {
    %c0 = arith.constant 0 : index
    %c0_0 = arith.constant 0 : index
    %0 = vector.load %arg1[%c0, %c0_0] : memref<3x128xf32, #tpu.memory_space<vmem>>, vector<3x128xf32>
    %c0_1 = arith.constant 0 : index
    %c0_2 = arith.constant 0 : index
    %1 = vector.load %arg2[%c0_1, %c0_2] : memref<32x3xf32, #tpu.memory_space<vmem>>, vector<32x3xf32>
    %cst = arith.constant dense<0.000000e+00> : vector<32x128xf32>
    %2 = tpu.matmul %1, %0, %cst {dimension_numbers = #tpu.dot_dimension_numbers<[1], [0], [0], [1], [0, 0, 1, 1], [], []>} : vector<32x3xf32>, vector<3x128xf32>, vector<32x128xf32> -> vector<32x128xf32>
    %c0_3 = arith.constant 0 : index
    %c0_4 = arith.constant 0 : index
    %3 = vector.load %arg3[%c0_3, %c0_4] : memref<32x1xf32, #tpu.memory_space<vmem>>, vector<32x1xf32>
    %4 = vector.broadcast %3 : vector<32x1xf32> to vector<32x128xf32>
    %5 = arith.addf %2, %4 : vector<32x128xf32>
    %6 = math.sin %5 : vector<32x128xf32>
    %c0_5 = arith.constant 0 : index
    %c0_6 = arith.constant 0 : index
    %7 = vector.load %arg4[%c0_5, %c0_6] : memref<32x32xf32, #tpu.memory_space<vmem>>, vector<32x32xf32>
    %cst_7 = arith.constant dense<0.000000e+00> : vector<32x128xf32>
    %8 = tpu.matmul %7, %6, %cst_7 {dimension_numbers = #tpu.dot_dimension_numbers<[1], [0], [0], [1], [0, 0, 1, 1], [], []>} : vector<32x32xf32>, vector<32x128xf32>, vector<32x128xf32> -> vector<32x128xf32>
    %c0_8 = arith.constant 0 : index
    %c0_9 = arith.constant 0 : index
    %9 = vector.load %arg5[%c0_8, %c0_9] : memref<32x1xf32, #tpu.memory_space<vmem>>, vector<32x1xf32>
    %10 = vector.broadcast %9 : vector<32x1xf32> to vector<32x128xf32>
    %11 = arith.addf %8, %10 : vector<32x128xf32>
    %12 = math.sin %11 : vector<32x128xf32>
    %c0_10 = arith.constant 0 : index
    %c0_11 = arith.constant 0 : index
    %13 = vector.load %arg6[%c0_10, %c0_11] : memref<1x32xf32, #tpu.memory_space<vmem>>, vector<1x32xf32>
    %cst_12 = arith.constant dense<0.000000e+00> : vector<1x128xf32>
    %14 = tpu.matmul %13, %12, %cst_12 {dimension_numbers = #tpu.dot_dimension_numbers<[1], [0], [0], [1], [0, 0, 1, 1], [], []>} : vector<1x32xf32>, vector<32x128xf32>, vector<1x128xf32> -> vector<1x128xf32>
    %c0_13 = arith.constant 0 : index
    %c0_14 = arith.constant 0 : index
    %15 = vector.load %arg7[%c0_13, %c0_14] : memref<1x1xf32, #tpu.memory_space<vmem>>, vector<1x1xf32>
    %16 = vector.broadcast %15 : vector<1x1xf32> to vector<1x128xf32>
    %17 = arith.addf %14, %16 : vector<1x128xf32>
    %c0_15 = arith.constant 0 : index
    %c0_16 = arith.constant 0 : index
    %18 = vector.load %arg14[%c0_15, %c0_16] : memref<2x128xf32, #tpu.memory_space<vmem>>, vector<1x128xf32>
    tpu.vector_store %arg14[%c0_15, %c0_16], %17 {strides = array<i32>} : memref<2x128xf32, #tpu.memory_space<vmem>>, vector<1x128xf32>,
    %c0_17 = arith.constant 0 : index
    %c0_18 = arith.constant 0 : index
    %19 = vector.load %arg8[%c0_17, %c0_18] : memref<32x3xf32, #tpu.memory_space<vmem>>, vector<32x3xf32>
    %cst_19 = arith.constant dense<0.000000e+00> : vector<32x128xf32>
    %20 = tpu.matmul %19, %0, %cst_19 {dimension_numbers = #tpu.dot_dimension_numbers<[1], [0], [0], [1], [0, 0, 1, 1], [], []>} : vector<32x3xf32>, vector<3x128xf32>, vector<32x128xf32> -> vector<32x128xf32>
    %c0_20 = arith.constant 0 : index
    %c0_21 = arith.constant 0 : index
    %21 = vector.load %arg9[%c0_20, %c0_21] : memref<32x1xf32, #tpu.memory_space<vmem>>, vector<32x1xf32>
    %22 = vector.broadcast %21 : vector<32x1xf32> to vector<32x128xf32>
    %23 = arith.addf %20, %22 : vector<32x128xf32>
    %24 = math.sin %23 : vector<32x128xf32>
    %c0_22 = arith.constant 0 : index
    %c0_23 = arith.constant 0 : index
    %25 = vector.load %arg10[%c0_22, %c0_23] : memref<32x32xf32, #tpu.memory_space<vmem>>, vector<32x32xf32>
    %cst_24 = arith.constant dense<0.000000e+00> : vector<32x128xf32>
    %26 = tpu.matmul %25, %24, %cst_24 {dimension_numbers = #tpu.dot_dimension_numbers<[1], [0], [0], [1], [0, 0, 1, 1], [], []>} : vector<32x32xf32>, vector<32x128xf32>, vector<32x128xf32> -> vector<32x128xf32>
    %c0_25 = arith.constant 0 : index
    %c0_26 = arith.constant 0 : index
    %27 = vector.load %arg11[%c0_25, %c0_26] : memref<32x1xf32, #tpu.memory_space<vmem>>, vector<32x1xf32>
    %28 = vector.broadcast %27 : vector<32x1xf32> to vector<32x128xf32>
    %29 = arith.addf %26, %28 : vector<32x128xf32>
    %30 = math.sin %29 : vector<32x128xf32>
    %c0_27 = arith.constant 0 : index
    %c0_28 = arith.constant 0 : index
    %31 = vector.load %arg12[%c0_27, %c0_28] : memref<1x32xf32, #tpu.memory_space<vmem>>, vector<1x32xf32>
    %cst_29 = arith.constant dense<0.000000e+00> : vector<1x128xf32>
    %32 = tpu.matmul %31, %30, %cst_29 {dimension_numbers = #tpu.dot_dimension_numbers<[1], [0], [0], [1], [0, 0, 1, 1], [], []>} : vector<1x32xf32>, vector<32x128xf32>, vector<1x128xf32> -> vector<1x128xf32>
    %c0_30 = arith.constant 0 : index
    %c0_31 = arith.constant 0 : index
    %33 = vector.load %arg13[%c0_30, %c0_31] : memref<1x1xf32, #tpu.memory_space<vmem>>, vector<1x1xf32>
    %34 = vector.broadcast %33 : vector<1x1xf32> to vector<1x128xf32>
    %35 = arith.addf %32, %34 : vector<1x128xf32>
    %c1 = arith.constant 1 : index
    %c0_32 = arith.constant 0 : index
    %36 = vector.load %arg14[%c1, %c0_32] : memref<2x128xf32, #tpu.memory_space<vmem>>, vector<1x128xf32>
    tpu.vector_store %arg14[%c1, %c0_32], %35 {strides = array<i32>} : memref<2x128xf32, #tpu.memory_space<vmem>>, vector<1x128xf32>,
    return
  }
  func.func @transform_0(%arg0: i32) -> (i32, i32) {
    %c0_i32 = arith.constant 0 : i32
    %c0_i32_0 = arith.constant 0 : i32
    return %c0_i32, %arg0 : i32, i32
  }
  func.func @transform_1(%arg0: i32) -> (i32, i32) {
    %c0_i32 = arith.constant 0 : i32
    %c0_i32_0 = arith.constant 0 : i32
    %c0_i32_1 = arith.constant 0 : i32
    return %c0_i32, %c0_i32_0 : i32, i32
  }
  func.func @transform_2(%arg0: i32) -> (i32, i32) {
    %c0_i32 = arith.constant 0 : i32
    %c0_i32_0 = arith.constant 0 : i32
    %c0_i32_1 = arith.constant 0 : i32
    return %c0_i32, %c0_i32_0 : i32, i32
  }
  func.func @transform_3(%arg0: i32) -> (i32, i32) {
    %c0_i32 = arith.constant 0 : i32
    %c0_i32_0 = arith.constant 0 : i32
    %c0_i32_1 = arith.constant 0 : i32
    return %c0_i32, %c0_i32_0 : i32, i32
  }
  func.func @transform_4(%arg0: i32) -> (i32, i32) {
    %c0_i32 = arith.constant 0 : i32
    %c0_i32_0 = arith.constant 0 : i32
    %c0_i32_1 = arith.constant 0 : i32
    return %c0_i32, %c0_i32_0 : i32, i32
  }
  func.func @transform_5(%arg0: i32) -> (i32, i32) {
    %c0_i32 = arith.constant 0 : i32
    %c0_i32_0 = arith.constant 0 : i32
    %c0_i32_1 = arith.constant 0 : i32
    return %c0_i32, %c0_i32_0 : i32, i32
  }
  func.func @transform_6(%arg0: i32) -> (i32, i32) {
    %c0_i32 = arith.constant 0 : i32
    %c0_i32_0 = arith.constant 0 : i32
    %c0_i32_1 = arith.constant 0 : i32
    return %c0_i32, %c0_i32_0 : i32, i32
  }
  func.func @transform_7(%arg0: i32) -> (i32, i32) {
    %c0_i32 = arith.constant 0 : i32
    %c0_i32_0 = arith.constant 0 : i32
    %c0_i32_1 = arith.constant 0 : i32
    return %c0_i32, %c0_i32_0 : i32, i32
  }
  func.func @transform_8(%arg0: i32) -> (i32, i32) {
    %c0_i32 = arith.constant 0 : i32
    %c0_i32_0 = arith.constant 0 : i32
    %c0_i32_1 = arith.constant 0 : i32
    return %c0_i32, %c0_i32_0 : i32, i32
  }
  func.func @transform_9(%arg0: i32) -> (i32, i32) {
    %c0_i32 = arith.constant 0 : i32
    %c0_i32_0 = arith.constant 0 : i32
    %c0_i32_1 = arith.constant 0 : i32
    return %c0_i32, %c0_i32_0 : i32, i32
  }
  func.func @transform_10(%arg0: i32) -> (i32, i32) {
    %c0_i32 = arith.constant 0 : i32
    %c0_i32_0 = arith.constant 0 : i32
    %c0_i32_1 = arith.constant 0 : i32
    return %c0_i32, %c0_i32_0 : i32, i32
  }
  func.func @transform_11(%arg0: i32) -> (i32, i32) {
    %c0_i32 = arith.constant 0 : i32
    %c0_i32_0 = arith.constant 0 : i32
    %c0_i32_1 = arith.constant 0 : i32
    return %c0_i32, %c0_i32_0 : i32, i32
  }
  func.func @transform_12(%arg0: i32) -> (i32, i32) {
    %c0_i32 = arith.constant 0 : i32
    %c0_i32_0 = arith.constant 0 : i32
    %c0_i32_1 = arith.constant 0 : i32
    return %c0_i32, %c0_i32_0 : i32, i32
  }
  func.func @transform_13(%arg0: i32) -> (i32, i32) {
    %c0_i32 = arith.constant 0 : i32
    %c0_i32_0 = arith.constant 0 : i32
    return %c0_i32, %arg0 : i32, i32
  }
}

</mosaic_0001>

<llo_original>
// kernel: tpu_custom_call.1
$region0: #{tpu_custom_call.1}
  #allocation0 [shape = 'u32[]', space=smem, size = 0x4, offset = 0x4, fixed_abs, tag = 'smem constant byte address 0x4 - core index']
  #allocation1 [shape = 'u32[144,128]{1,0:T(1,128)}', space=vmem, size = 0x12000, scoped, tag = 'internal scratch']
  #allocation2 [shape = 'f32[1,1]{1,0:T(1,128)S(1)}', space=vmem, size = 0x200, scoped, tag = 'scoped memory for tpu_custom_call.1']
  #allocation3 [shape = 'f32[1,1]{1,0:T(1,128)S(1)}', space=vmem, size = 0x200, scoped, tag = 'scoped memory for tpu_custom_call.1']
  %s0 = inlined_call_operand.vmem [shape: f32[3,256], index: 0, kind: input, shape index: {}]
  %s1 = inlined_call_operand.vmem [shape: f32[32,3], index: 1, kind: input, shape index: {}]
  %s2 = inlined_call_operand.vmem [shape: f32[32,1], index: 2, kind: input, shape index: {}]
  %s3 = inlined_call_operand.vmem [shape: f32[32,32], index: 3, kind: input, shape index: {}]
  %s4 = inlined_call_operand.vmem [shape: f32[32,1], index: 4, kind: input, shape index: {}]
  %s5 = inlined_call_operand.vmem [shape: f32[1,32], index: 5, kind: input, shape index: {}]
  %s6 = inlined_call_operand.<no memory space> [shape: f32[1,1], index: 6, kind: input, shape index: {}]
  %s7 = inlined_call_operand.vmem [shape: f32[32,3], index: 7, kind: input, shape index: {}]
  %s8 = inlined_call_operand.vmem [shape: f32[32,1], index: 8, kind: input, shape index: {}]
  %s9 = inlined_call_operand.vmem [shape: f32[32,32], index: 9, kind: input, shape index: {}]
  %s10 = inlined_call_operand.vmem [shape: f32[32,1], index: 10, kind: input, shape index: {}]
  %s11 = inlined_call_operand.vmem [shape: f32[1,32], index: 11, kind: input, shape index: {}]
  %s12 = inlined_call_operand.<no memory space> [shape: f32[1,1], index: 12, kind: input, shape index: {}]
  %s13 = inlined_call_operand.hbm [shape: f32[2,256], index: 13, kind: output, shape index: {}]
  %s14 = sld [smem:[#allocation0]]
  $region85: #{tpu_custom_call.1} parent=0
    _
  %s16 = ssub.s32 1, %s14
  %s17 = scalar_select 0, %s16, %s14
  %v18 = vstv %s6
  %19 = vst [vmem:[#allocation2] sm:$0x1] %v18
  %v20 = vstv %s12
  %21 = vst [vmem:[#allocation3] sm:$0x1] %v20
  $region1: #{tpu_custom_call.1} parent=0
    #allocation4 [shape = 'u8[2048]{0}', space=vmem, size = 0x800, scoped, tag = 'output window, operand 0']
    #allocation5 [shape = 's32[2]{0}', space=sflag, size = 0x8, scoped, tag = 'scoped memory for tpu_custom_call.1']
    %22 = vsyncpa [#allocation5], 0
    %s23 = scalar_lea.sflag [#allocation5], 1
    %24 = vsyncpa %s23, 0
    loop: start=0, step=1, limit=4
    $region2: #{tpu_custom_call.1} parent=1 // loop_pre_header
      _
    $region3: #{tpu_custom_call.1} parent=1 // loop_header
      %s26 = sphi 0, %s30
      %p27 = scmp.ge.s32.totalorder %s26, 4
      %s36 = sphi 0, %s38
      %s39 = sphi 0, %s36
      %s40 = sphi 0, %s39
      %s56 = sphi 0, %s40
      %s60 = sphi 0, %s60
      %s62 = sphi 0, %s60
      %s63 = sphi 0, %s62
      %s77 = sphi 0, %s63
      %s81 = sphi 0, %s81
      %s83 = sphi 0, %s81
      %s84 = sphi 0, %s83
      %s98 = sphi 0, %s84
      %s102 = sphi 0, %s102
      %s104 = sphi 0, %s102
      %s105 = sphi 0, %s104
      %s119 = sphi 0, %s105
      %s123 = sphi 0, %s123
      %s125 = sphi 0, %s123
      %s126 = sphi 0, %s125
      %s140 = sphi 0, %s126
      %s144 = sphi 0, %s144
      %s146 = sphi 0, %s144
      %s147 = sphi 0, %s146
      %s161 = sphi 0, %s147
      %s165 = sphi 0, %s165
      %s167 = sphi 0, %s165
      %s168 = sphi 0, %s167
      %s182 = sphi 0, %s168
      %s186 = sphi 0, %s186
      %s188 = sphi 0, %s186
      %s189 = sphi 0, %s188
      %s203 = sphi 0, %s189
      %s207 = sphi 0, %s207
      %s209 = sphi 0, %s207
      %s210 = sphi 0, %s209
      %s224 = sphi 0, %s210
      %s228 = sphi 0, %s228
      %s230 = sphi 0, %s228
      %s231 = sphi 0, %s230
      %s245 = sphi 0, %s231
      %s249 = sphi 0, %s249
      %s251 = sphi 0, %s249
      %s252 = sphi 0, %s251
      %s266 = sphi 0, %s252
      %s270 = sphi 0, %s270
      %s272 = sphi 0, %s270
      %s273 = sphi 0, %s272
      %s287 = sphi 0, %s273
      %s291 = sphi 0, %s291
      %s293 = sphi 0, %s291
      %s294 = sphi 0, %s293
      %s308 = sphi 0, %s294
      %s314 = sphi 0, %s316
      %s317 = sphi 0, %s314
      %s318 = sphi 0, %s317
      %s334 = sphi 0, %s318
    $region4: #{tpu_custom_call.1} parent=1 // loop_header_branch
      %29 = sbr.rel (%p27) target = $region8
    $region5: #{tpu_custom_call.1} parent=1 // loop_body
      %s31 = ssub.s32 %s26, 1
      %s32 = ssub.s32 %s26, 2
      %s33 = sadd.s32 %s26, 1
      %s34 = ssub.s32 %s26, %s33
      %p35 = scmp.eq.s32.totalorder %s34, 0
      %s37 = sadd.s32 %s36, 1
      %s38 = scalar_select %p35, %s36, %s37
      %p41 = pneg %p35
      %p42 = scmp.eq.s32.totalorder %s26, 1
      %p43 = por %p41, %p42
      %p44 = scmp.ne.s32.totalorder %s36, %s39
      %p45 = scmp.eq.s32.totalorder %s26, 0
      %p46 = por %p44, %p45
      %p47 = scmp.ne.s32.totalorder %s36, %s39
      %p48 = scmp.eq.s32.totalorder %s31, 1
      %p49 = por %p47, %p48
      %p50 = scmp.ne.s32.totalorder %s39, %s40
      %p51 = scmp.eq.s32.totalorder %s31, 0
      %p52 = por %p50, %p51
      %p53 = scmp.ne.s32.totalorder %s39, %s40
      %p54 = scmp.eq.s32.totalorder %s32, 1
      %p55 = por %p53, %p54
      %p57 = scmp.ne.s32.totalorder %s40, %s56
      %p58 = scmp.eq.s32.totalorder %s32, 0
      %p59 = por %p57, %p58
      %s61 = sadd.s32 %s60, 1
      %p64 = scmp.eq.s32.totalorder %s26, 1
      %p65 = scmp.ne.s32.totalorder %s60, %s62
      %p66 = scmp.eq.s32.totalorder %s26, 0
      %p67 = por %p65, %p66
      %p68 = scmp.ne.s32.totalorder %s60, %s62
      %p69 = scmp.eq.s32.totalorder %s31, 1
      %p70 = por %p68, %p69
      %p71 = scmp.ne.s32.totalorder %s62, %s63
      %p72 = scmp.eq.s32.totalorder %s31, 0
      %p73 = por %p71, %p72
      %p74 = scmp.ne.s32.totalorder %s62, %s63
      %p75 = scmp.eq.s32.totalorder %s32, 1
      %p76 = por %p74, %p75
      %p78 = scmp.ne.s32.totalorder %s63, %s77
      %p79 = scmp.eq.s32.totalorder %s32, 0
      %p80 = por %p78, %p79
      %s82 = sadd.s32 %s81, 1
      %p85 = scmp.eq.s32.totalorder %s26, 1
      %p86 = scmp.ne.s32.totalorder %s81, %s83
      %p87 = scmp.eq.s32.totalorder %s26, 0
      %p88 = por %p86, %p87
      %p89 = scmp.ne.s32.totalorder %s81, %s83
      %p90 = scmp.eq.s32.totalorder %s31, 1
      %p91 = por %p89, %p90
      %p92 = scmp.ne.s32.totalorder %s83, %s84
      %p93 = scmp.eq.s32.totalorder %s31, 0
      %p94 = por %p92, %p93
      %p95 = scmp.ne.s32.totalorder %s83, %s84
      %p96 = scmp.eq.s32.totalorder %s32, 1
      %p97 = por %p95, %p96
      %p99 = scmp.ne.s32.totalorder %s84, %s98
      %p100 = scmp.eq.s32.totalorder %s32, 0
      %p101 = por %p99, %p100
      %s103 = sadd.s32 %s102, 1
      %p106 = scmp.eq.s32.totalorder %s26, 1
      %p107 = scmp.ne.s32.totalorder %s102, %s104
      %p108 = scmp.eq.s32.totalorder %s26, 0
      %p109 = por %p107, %p108
      %p110 = scmp.ne.s32.totalorder %s102, %s104
      %p111 = scmp.eq.s32.totalorder %s31, 1
      %p112 = por %p110, %p111
      %p113 = scmp.ne.s32.totalorder %s104, %s105
      %p114 = scmp.eq.s32.totalorder %s31, 0
      %p115 = por %p113, %p114
      %p116 = scmp.ne.s32.totalorder %s104, %s105
      %p117 = scmp.eq.s32.totalorder %s32, 1
      %p118 = por %p116, %p117
      %p120 = scmp.ne.s32.totalorder %s105, %s119
      %p121 = scmp.eq.s32.totalorder %s32, 0
      %p122 = por %p120, %p121
      %s124 = sadd.s32 %s123, 1
      %p127 = scmp.eq.s32.totalorder %s26, 1
      %p128 = scmp.ne.s32.totalorder %s123, %s125
      %p129 = scmp.eq.s32.totalorder %s26, 0
      %p130 = por %p128, %p129
      %p131 = scmp.ne.s32.totalorder %s123, %s125
      %p132 = scmp.eq.s32.totalorder %s31, 1
      %p133 = por %p131, %p132
      %p134 = scmp.ne.s32.totalorder %s125, %s126
      %p135 = scmp.eq.s32.totalorder %s31, 0
      %p136 = por %p134, %p135
      %p137 = scmp.ne.s32.totalorder %s125, %s126
      %p138 = scmp.eq.s32.totalorder %s32, 1
      %p139 = por %p137, %p138
      %p141 = scmp.ne.s32.totalorder %s126, %s140
      %p142 = scmp.eq.s32.totalorder %s32, 0
      %p143 = por %p141, %p142
      %s145 = sadd.s32 %s144, 1
      %p148 = scmp.eq.s32.totalorder %s26, 1
      %p149 = scmp.ne.s32.totalorder %s144, %s146
      %p150 = scmp.eq.s32.totalorder %s26, 0
      %p151 = por %p149, %p150
      %p152 = scmp.ne.s32.totalorder %s144, %s146
      %p153 = scmp.eq.s32.totalorder %s31, 1
      %p154 = por %p152, %p153
      %p155 = scmp.ne.s32.totalorder %s146, %s147
      %p156 = scmp.eq.s32.totalorder %s31, 0
      %p157 = por %p155, %p156
      %p158 = scmp.ne.s32.totalorder %s146, %s147
      %p159 = scmp.eq.s32.totalorder %s32, 1
      %p160 = por %p158, %p159
      %p162 = scmp.ne.s32.totalorder %s147, %s161
      %p163 = scmp.eq.s32.totalorder %s32, 0
      %p164 = por %p162, %p163
      %s166 = sadd.s32 %s165, 1
      %p169 = scmp.eq.s32.totalorder %s26, 1
      %p170 = scmp.ne.s32.totalorder %s165, %s167
      %p171 = scmp.eq.s32.totalorder %s26, 0
      %p172 = por %p170, %p171
      %p173 = scmp.ne.s32.totalorder %s165, %s167
      %p174 = scmp.eq.s32.totalorder %s31, 1
      %p175 = por %p173, %p174
      %p176 = scmp.ne.s32.totalorder %s167, %s168
      %p177 = scmp.eq.s32.totalorder %s31, 0
      %p178 = por %p176, %p177
      %p179 = scmp.ne.s32.totalorder %s167, %s168
      %p180 = scmp.eq.s32.totalorder %s32, 1
      %p181 = por %p179, %p180
      %p183 = scmp.ne.s32.totalorder %s168, %s182
      %p184 = scmp.eq.s32.totalorder %s32, 0
      %p185 = por %p183, %p184
      %s187 = sadd.s32 %s186, 1
      %p190 = scmp.eq.s32.totalorder %s26, 1
      %p191 = scmp.ne.s32.totalorder %s186, %s188
      %p192 = scmp.eq.s32.totalorder %s26, 0
      %p193 = por %p191, %p192
      %p194 = scmp.ne.s32.totalorder %s186, %s188
      %p195 = scmp.eq.s32.totalorder %s31, 1
      %p196 = por %p194, %p195
      %p197 = scmp.ne.s32.totalorder %s188, %s189
      %p198 = scmp.eq.s32.totalorder %s31, 0
      %p199 = por %p197, %p198
      %p200 = scmp.ne.s32.totalorder %s188, %s189
      %p201 = scmp.eq.s32.totalorder %s32, 1
      %p202 = por %p200, %p201
      %p204 = scmp.ne.s32.totalorder %s189, %s203
      %p205 = scmp.eq.s32.totalorder %s32, 0
      %p206 = por %p204, %p205
      %s208 = sadd.s32 %s207, 1
      %p211 = scmp.eq.s32.totalorder %s26, 1
      %p212 = scmp.ne.s32.totalorder %s207, %s209
      %p213 = scmp.eq.s32.totalorder %s26, 0
      %p214 = por %p212, %p213
      %p215 = scmp.ne.s32.totalorder %s207, %s209
      %p216 = scmp.eq.s32.totalorder %s31, 1
      %p217 = por %p215, %p216
      %p218 = scmp.ne.s32.totalorder %s209, %s210
      %p219 = scmp.eq.s32.totalorder %s31, 0
      %p220 = por %p218, %p219
      %p221 = scmp.ne.s32.totalorder %s209, %s210
      %p222 = scmp.eq.s32.totalorder %s32, 1
      %p223 = por %p221, %p222
      %p225 = scmp.ne.s32.totalorder %s210, %s224
      %p226 = scmp.eq.s32.totalorder %s32, 0
      %p227 = por %p225, %p226
      %s229 = sadd.s32 %s228, 1
      %p232 = scmp.eq.s32.totalorder %s26, 1
      %p233 = scmp.ne.s32.totalorder %s228, %s230
      %p234 = scmp.eq.s32.totalorder %s26, 0
      %p235 = por %p233, %p234
      %p236 = scmp.ne.s32.totalorder %s228, %s230
      %p237 = scmp.eq.s32.totalorder %s31, 1
      %p238 = por %p236, %p237
      %p239 = scmp.ne.s32.totalorder %s230, %s231
      %p240 = scmp.eq.s32.totalorder %s31, 0
      %p241 = por %p239, %p240
      %p242 = scmp.ne.s32.totalorder %s230, %s231
      %p243 = scmp.eq.s32.totalorder %s32, 1
      %p244 = por %p242, %p243
      %p246 = scmp.ne.s32.totalorder %s231, %s245
      %p247 = scmp.eq.s32.totalorder %s32, 0
      %p248 = por %p246, %p247
      %s250 = sadd.s32 %s249, 1
      %p253 = scmp.eq.s32.totalorder %s26, 1
      %p254 = scmp.ne.s32.totalorder %s249, %s251
      %p255 = scmp.eq.s32.totalorder %s26, 0
      %p256 = por %p254, %p255
      %p257 = scmp.ne.s32.totalorder %s249, %s251
      %p258 = scmp.eq.s32.totalorder %s31, 1
      %p259 = por %p257, %p258
      %p260 = scmp.ne.s32.totalorder %s251, %s252
      %p261 = scmp.eq.s32.totalorder %s31, 0
      %p262 = por %p260, %p261
      %p263 = scmp.ne.s32.totalorder %s251, %s252
      %p264 = scmp.eq.s32.totalorder %s32, 1
      %p265 = por %p263, %p264
      %p267 = scmp.ne.s32.totalorder %s252, %s266
      %p268 = scmp.eq.s32.totalorder %s32, 0
      %p269 = por %p267, %p268
      %s271 = sadd.s32 %s270, 1
      %p274 = scmp.eq.s32.totalorder %s26, 1
      %p275 = scmp.ne.s32.totalorder %s270, %s272
      %p276 = scmp.eq.s32.totalorder %s26, 0
      %p277 = por %p275, %p276
      %p278 = scmp.ne.s32.totalorder %s270, %s272
      %p279 = scmp.eq.s32.totalorder %s31, 1
      %p280 = por %p278, %p279
      %p281 = scmp.ne.s32.totalorder %s272, %s273
      %p282 = scmp.eq.s32.totalorder %s31, 0
      %p283 = por %p281, %p282
      %p284 = scmp.ne.s32.totalorder %s272, %s273
      %p285 = scmp.eq.s32.totalorder %s32, 1
      %p286 = por %p284, %p285
      %p288 = scmp.ne.s32.totalorder %s273, %s287
      %p289 = scmp.eq.s32.totalorder %s32, 0
      %p290 = por %p288, %p289
      %s292 = sadd.s32 %s291, 1
      %p295 = scmp.eq.s32.totalorder %s26, 1
      %p296 = scmp.ne.s32.totalorder %s291, %s293
      %p297 = scmp.eq.s32.totalorder %s26, 0
      %p298 = por %p296, %p297
      %p299 = scmp.ne.s32.totalorder %s291, %s293
      %p300 = scmp.eq.s32.totalorder %s31, 1
      %p301 = por %p299, %p300
      %p302 = scmp.ne.s32.totalorder %s293, %s294
      %p303 = scmp.eq.s32.totalorder %s31, 0
      %p304 = por %p302, %p303
      %p305 = scmp.ne.s32.totalorder %s293, %s294
      %p306 = scmp.eq.s32.totalorder %s32, 1
      %p307 = por %p305, %p306
      %p309 = scmp.ne.s32.totalorder %s294, %s308
      %p310 = scmp.eq.s32.totalorder %s32, 0
      %p311 = por %p309, %p310
      %s312 = ssub.s32 %s26, %s33
      %p313 = scmp.eq.s32.totalorder %s312, 0
      %s315 = sadd.s32 %s314, 1
      %s316 = scalar_select %p313, %s314, %s315
      %p319 = pneg %p313
      %p320 = scmp.eq.s32.totalorder %s26, 1
      %p321 = por %p319, %p320
      %p322 = scmp.ne.s32.totalorder %s314, %s317
      %p323 = scmp.eq.s32.totalorder %s26, 0
      %p324 = por %p322, %p323
      %p325 = scmp.ne.s32.totalorder %s314, %s317
      %p326 = scmp.eq.s32.totalorder %s31, 1
      %p327 = por %p325, %p326
      %p328 = scmp.ne.s32.totalorder %s317, %s318
      %p329 = scmp.eq.s32.totalorder %s31, 0
      %p330 = por %p328, %p329
      %p331 = scmp.ne.s32.totalorder %s317, %s318
      %p332 = scmp.eq.s32.totalorder %s32, 1
      %p333 = por %p331, %p332
      %p335 = scmp.ne.s32.totalorder %s318, %s334
      %p336 = scmp.eq.s32.totalorder %s32, 0
      %p337 = por %p335, %p336
      %p338 = scmp.le.s32.totalorder 1, %s26
      %p339 = scmp.lt.s32.totalorder %s26, 3
      %p340 = pnand %p338, %p339
      %p341 = pneg %p340
      // Predicated region
      $region9: #{tpu_custom_call.1} parent=5 // pred_check
        _
      $region10: #{tpu_custom_call.1} parent=5 // pred_check_branch
        %343 = sbr.rel (%p340) target = $region12
      $region11: #{tpu_custom_call.1} parent=5 // pred_region
        %s344 = ssub.s32 %s26, 1
        // Predicated region
        $region13: #{tpu_custom_call.1} parent=11 // pred_check
          %p345 = pneg %p73
        $region14: #{tpu_custom_call.1} parent=11 // pred_check_branch
          %347 = sbr.rel (%p345) target = $region16
        $region15: #{tpu_custom_call.1} parent=11 // pred_region
          _
        $region16: #{tpu_custom_call.1} parent=11 // pred_fallthru
          _
        // Predicated region
        $region17: #{tpu_custom_call.1} parent=11 // pred_check
          %p348 = pneg %p94
        $region18: #{tpu_custom_call.1} parent=11 // pred_check_branch
          %350 = sbr.rel (%p348) target = $region20
        $region19: #{tpu_custom_call.1} parent=11 // pred_region
          _
        $region20: #{tpu_custom_call.1} parent=11 // pred_fallthru
          _
        // Predicated region
        $region21: #{tpu_custom_call.1} parent=11 // pred_check
          %p351 = pneg %p115
        $region22: #{tpu_custom_call.1} parent=11 // pred_check_branch
          %353 = sbr.rel (%p351) target = $region24
        $region23: #{tpu_custom_call.1} parent=11 // pred_region
          _
        $region24: #{tpu_custom_call.1} parent=11 // pred_fallthru
          _
        // Predicated region
        $region25: #{tpu_custom_call.1} parent=11 // pred_check
          %p354 = pneg %p136
        $region26: #{tpu_custom_call.1} parent=11 // pred_check_branch
          %356 = sbr.rel (%p354) target = $region28
        $region27: #{tpu_custom_call.1} parent=11 // pred_region
          _
        $region28: #{tpu_custom_call.1} parent=11 // pred_fallthru
          _
        // Predicated region
        $region29: #{tpu_custom_call.1} parent=11 // pred_check
          %p357 = pneg %p157
        $region30: #{tpu_custom_call.1} parent=11 // pred_check_branch
          %359 = sbr.rel (%p357) target = $region32
        $region31: #{tpu_custom_call.1} parent=11 // pred_region
          _
        $region32: #{tpu_custom_call.1} parent=11 // pred_fallthru
          _
        // Predicated region
        $region33: #{tpu_custom_call.1} parent=11 // pred_check
          %p360 = pneg %p178
        $region34: #{tpu_custom_call.1} parent=11 // pred_check_branch
          %362 = sbr.rel (%p360) target = $region36
        $region35: #{tpu_custom_call.1} parent=11 // pred_region
          _
        $region36: #{tpu_custom_call.1} parent=11 // pred_fallthru
          _
        // Predicated region
        $region37: #{tpu_custom_call.1} parent=11 // pred_check
          %p363 = pneg %p199
        $region38: #{tpu_custom_call.1} parent=11 // pred_check_branch
          %365 = sbr.rel (%p363) target = $region40
        $region39: #{tpu_custom_call.1} parent=11 // pred_region
          _
        $region40: #{tpu_custom_call.1} parent=11 // pred_fallthru
          _
        // Predicated region
        $region41: #{tpu_custom_call.1} parent=11 // pred_check
          %p366 = pneg %p220
        $region42: #{tpu_custom_call.1} parent=11 // pred_check_branch
          %368 = sbr.rel (%p366) target = $region44
        $region43: #{tpu_custom_call.1} parent=11 // pred_region
          _
        $region44: #{tpu_custom_call.1} parent=11 // pred_fallthru
          _
        // Predicated region
        $region45: #{tpu_custom_call.1} parent=11 // pred_check
          %p369 = pneg %p241
        $region46: #{tpu_custom_call.1} parent=11 // pred_check_branch
          %371 = sbr.rel (%p369) target = $region48
        $region47: #{tpu_custom_call.1} parent=11 // pred_region
          _
        $region48: #{tpu_custom_call.1} parent=11 // pred_fallthru
          _
        // Predicated region
        $region49: #{tpu_custom_call.1} parent=11 // pred_check
          %p372 = pneg %p262
        $region50: #{tpu_custom_call.1} parent=11 // pred_check_branch
          %374 = sbr.rel (%p372) target = $region52
        $region51: #{tpu_custom_call.1} parent=11 // pred_region
          _
        $region52: #{tpu_custom_call.1} parent=11 // pred_fallthru
          _
        // Predicated region
        $region53: #{tpu_custom_call.1} parent=11 // pred_check
          %p375 = pneg %p283
        $region54: #{tpu_custom_call.1} parent=11 // pred_check_branch
          %377 = sbr.rel (%p375) target = $region56
        $region55: #{tpu_custom_call.1} parent=11 // pred_region
          _
        $region56: #{tpu_custom_call.1} parent=11 // pred_fallthru
          _
        // Predicated region
        $region57: #{tpu_custom_call.1} parent=11 // pred_check
          %p378 = pneg %p304
        $region58: #{tpu_custom_call.1} parent=11 // pred_check_branch
          %380 = sbr.rel (%p378) target = $region60
        $region59: #{tpu_custom_call.1} parent=11 // pred_region
          _
        $region60: #{tpu_custom_call.1} parent=11 // pred_fallthru
          _
      $region12: #{tpu_custom_call.1} parent=5 // pred_fallthru
        _
      %p381 = scmp.lt.s32.totalorder %s26, 2
      // Predicated region
      $region61: #{tpu_custom_call.1} parent=5 // pred_check
        %p382 = pneg %p381
      $region62: #{tpu_custom_call.1} parent=5 // pred_check_branch
        %384 = sbr.rel (%p382) target = $region64
      $region63: #{tpu_custom_call.1} parent=5 // pred_region
        // Predicated region
        $region65: #{tpu_custom_call.1} parent=63 // pred_check
          %p385 = pneg %p46
        $region66: #{tpu_custom_call.1} parent=63 // pred_check_branch
          %387 = sbr.rel (%p385) target = $region68
        $region67: #{tpu_custom_call.1} parent=63 // pred_region
          %p388 = scmp.lt.s32.totalorder %s26, 1
          %s389 = scalar_select %p388, %s26, 1
          %s390 = smul.addr %s389, 4
          %s391 = scalar_lea.vmem %s0, %s390
        $region68: #{tpu_custom_call.1} parent=63 // pred_fallthru
          _
      $region64: #{tpu_custom_call.1} parent=5 // pred_fallthru
        _
      %p392 = scmp.le.s32.totalorder 1, %s26
      %p393 = scmp.lt.s32.totalorder %s26, 3
      %p394 = pnand %p392, %p393
      %p395 = pneg %p394
      // Predicated region
      $region69: #{tpu_custom_call.1} parent=5 // pred_check
        _
      $region70: #{tpu_custom_call.1} parent=5 // pred_check_branch
        %397 = sbr.rel (%p394) target = $region72
      $region71: #{tpu_custom_call.1} parent=5 // pred_region
        %s398 = ssub.s32 %s26, 1
        %p399 = scmp.lt.s32.totalorder %s31, 1
        %s400 = scalar_select %p399, %s31, 1
        %s401 = smul.addr %s400, 4
        %s402 = scalar_lea.vmem %s0, %s401
        %p403 = pneg %p52
        %p404 = pneg %p49
        %p405 = pneg %p73
        %p406 = pneg %p70
        %p407 = pneg %p94
        %p408 = pneg %p91
        %p409 = pneg %p115
        %p410 = pneg %p112
        %p411 = pneg %p136
        %p412 = pneg %p133
        %p413 = pneg %p157
        %p414 = pneg %p154
        %p415 = pneg %p178
        %p416 = pneg %p175
        %p417 = pneg %p199
        %p418 = pneg %p196
        %p419 = pneg %p220
        %p420 = pneg %p217
        %p421 = pneg %p241
        %p422 = pneg %p238
        %p423 = pneg %p262
        %p424 = pneg %p259
        %p425 = pneg %p283
        %p426 = pneg %p280
        %p427 = pneg %p304
        %p428 = pneg %p301
        %p429 = pneg %p330
        %p430 = pneg %p327
        %s431 = sand.u32 %s317, 1
        %s432 = scalar_lea.sflag [#allocation5], %s431
        %s433 = sand.u32 %s317, 1
        %s434 = smul.addr %s433, 2
        %s435 = scalar_lea.vmem [#allocation4], %s434
        %p436 = scmp.lt.s32.totalorder %s31, 1
        %s437 = scalar_select %p436, %s31, 1
        %s438 = smul.addr %s437, 4
        %s439 = scalar_lea.vmem %s0, %s438
        %v440 = vld [vmem:[%s439] sm:$0x7]
        %v441 = vld [vmem:[%s1] sm:$0xff]
        %v442 = vld [vmem:[%s1 + $0x8] sm:$0xff]
        %v443 = vld [vmem:[%s1 + $0x10] sm:$0xff]
        %v444 = vld [vmem:[%s1 + $0x18] sm:$0xff]
        %v445 = vld [vmem:[%s2] sm:$0xff]
        %v446 = vld [vmem:[%s2 + $0x8] sm:$0xff]
        %v447 = vld [vmem:[%s2 + $0x10] sm:$0xff]
        %v448 = vld [vmem:[%s2 + $0x18] sm:$0xff]
        %450 = vset.pattern.permute.xlu0 0
        %451 = vperm.xlu0 %450, %v445
        %v452 = vpop.permute.xlu0 %451
        %455 = vset.pattern.permute.xlu0 0
        %456 = vperm.xlu0 %455, %v446
        %v457 = vpop.permute.xlu0 %456
        %460 = vset.pattern.permute.xlu0 0
        %461 = vperm.xlu0 %460, %v447
        %v462 = vpop.permute.xlu0 %461
        %465 = vset.pattern.permute.xlu0 0
        %466 = vperm.xlu0 %465, %v448
        %v467 = vpop.permute.xlu0 %466
        %vm469 = vcmask 23552
        %v471 = vsel %vm469, %v441, 0
        %v474 = vsel %vm469, %v442, 0
        %v477 = vsel %vm469, %v443, 0
        %v480 = vsel %vm469, %v444, 0
        %vm482 = vcmask 1042432
        %v484 = vsel %vm482, %v440, 0
        %486 = vmatprep.subr.mxu0 0.0
        %487 = vmatpush1.msra.mxu0 %v484
        %488 = vmatprep.subr.mxu0 0.0
        %489 = vmatpush1.msra.mxu0 0.0
        %490 = vmatprep.subr.mxu0 0.0
        %491 = vmatpush1.msra.mxu0 0.0
        %492 = vmatprep.subr.mxu0 0.0
        %493 = vmatpush1.msra.mxu0 0.0
        %494 = vmatprep.subr.mxu0 0.0
        %495 = vmatpush1.msra.mxu0 0.0
        %496 = vmatprep.subr.mxu0 0.0
        %497 = vmatpush1.msra.mxu0 0.0
        %498 = vmatprep.subr.mxu0 0.0
        %499 = vmatpush1.msra.mxu0 0.0
        %500 = vmatprep.subr.mxu0 0.0
        %501 = vmatpush1.msra.mxu0 0.0
        %502 = vmatprep.subr.mxu0 0.0
        %503 = vmatpush1.msra.mxu0 0.0
        %504 = vmatprep.subr.mxu0 0.0
        %505 = vmatpush1.msra.mxu0 0.0
        %506 = vmatprep.subr.mxu0 0.0
        %507 = vmatpush1.msra.mxu0 0.0
        %508 = vmatprep.subr.mxu0 0.0
        %509 = vmatpush1.msra.mxu0 0.0
        %510 = vmatprep.subr.mxu0 0.0
        %511 = vmatpush1.msra.mxu0 0.0
        %512 = vmatprep.subr.mxu0 0.0
        %513 = vmatpush1.msra.mxu0 0.0
        %514 = vmatprep.subr.mxu0 0.0
        %515 = vmatpush1.msra.mxu0 0.0
        %516 = vmatprep.subr.mxu0 0.0
        %517 = vmatpush1.msra.mxu0 0.0
        %518 = vmatprep.subr.mxu0 0.0
        %519 = vmatpush1.msra.mxu0 0.0
        %520 = vmatprep.subr.mxu0 0.0
        %521 = vmatpush1.msra.mxu0 0.0
        %522 = vmatprep.subr.mxu0 0.0
        %523 = vmatpush1.msra.mxu0 0.0
        %524 = vmatprep.subr.mxu0 0.0
        %525 = vmatpush1.msra.mxu0 0.0
        %526 = vmatprep.subr.mxu0 0.0
        %527 = vmatpush1.msra.mxu0 0.0
        %528 = vmatprep.subr.mxu0 0.0
        %529 = vmatpush1.msra.mxu0 0.0
        %530 = vmatprep.subr.mxu0 0.0
        %531 = vmatpush1.msra.mxu0 0.0
        %532 = vmatprep.subr.mxu0 0.0
        %533 = vmatpush1.msra.mxu0 0.0
        %534 = vmatprep.subr.mxu0 0.0
        %535 = vmatpush1.msra.mxu0 0.0
        %536 = vmatprep.subr.mxu0 0.0
        %537 = vmatpush1.msra.mxu0 0.0
        %538 = vmatprep.subr.mxu0 0.0
        %539 = vmatpush1.msra.mxu0 0.0
        %540 = vmatprep.subr.mxu0 0.0
        %541 = vmatpush1.msra.mxu0 0.0
        %542 = vmatprep.subr.mxu0 0.0
        %543 = vmatpush1.msra.mxu0 0.0
        %544 = vmatprep.subr.mxu0 0.0
        %545 = vmatpush1.msra.mxu0 0.0
        %546 = vmatprep.subr.mxu0 0.0
        %547 = vmatpush1.msra.mxu0 0.0
        %548 = vmatprep.subr.mxu0 0.0
        %549 = vmatpush1.msra.mxu0 0.0
        %550 = vmatprep.mubr.f32.mxu0 0.0
        %551 = vmatmul.mubr.f32.gmra.mrb[0].mxu0 %v471
        %v552 = vpop.f32.mrb[0].mxu0
        %v553 = vadd.f32 %v452, %v552
        %v554 = vpop.f32.mrb[0].mxu0
        %555 = vmatprep.mubr.f32.mxu0 0.0
        %556 = vmatmul.mubr.f32.gmra.mrb[0].mxu0 %v474
        %v557 = vpop.f32.mrb[0].mxu0
        %v558 = vadd.f32 %v457, %v557
        %v559 = vpop.f32.mrb[0].mxu0
        %560 = vmatprep.mubr.f32.mxu0 0.0
        %561 = vmatmul.mubr.f32.gmra.mrb[0].mxu0 %v477
        %v562 = vpop.f32.mrb[0].mxu0
        %v563 = vadd.f32 %v462, %v562
        %v564 = vpop.f32.mrb[0].mxu0
        %565 = vmatprep.mubr.f32.mxu0 0.0
        %566 = vmatmul.mubr.f32.gmra.mrb[0].mxu0 %v480
        %v567 = vpop.f32.mrb[0].mxu0
        %v568 = vadd.f32 %v467, %v567
        %v569 = vpop.f32.mrb[0].mxu0
        %570 = vdwg.mxu0
        %v571 = vand.u32 2147483647, %v553
        %vm572 = vcmp.le.f32.partialorder %v571, 0.7853982
        %vm573 = vcmp.lt.s32.totalorder %v553, 0
        %v574 = vand.u32 %v553, 2139095040
        %v575 = vshrl.u32 %v574, 23
        %v576 = vsub.s32 %v575, 127
        %v577 = vand.u32 2147483647, %v553
        %v578 = vand.u32 %v577, 8388607
        %v579 = vor.u32 %v578, 8388608
        %v580 = vsub.s32 0, %v579
        %v581 = vadd.s32 %v576, 1
        %vm582 = vcmp.gt.s32.totalorder %v581, 0
        %v583 = vsel %vm582, %v581, 0
        %v584 = vshrl.u32 %v583, 5
        %v585 = vand.u32 %v583, 31
        %v586 = vsub.s32 32, %v585
        %v587 = vshrl.u32 683565275, %v586
        %v588 = vshll.u32 683565275, %v585
        %v589 = vshrl.u32 2475754826, %v586
        %v590 = vor.u32 %v588, %v589
        %v591 = vshll.u32 2475754826, %v585
        %v592 = vshrl.u32 2131351028, %v586
        %v593 = vor.u32 %v591, %v592
        %v594 = vshll.u32 2131351028, %v585
        %v595 = vshrl.u32 2102212464, %v586
        %v596 = vor.u32 %v594, %v595
        %v597 = vshll.u32 2102212464, %v585
        %v598 = vshrl.u32 920167782, %v586
        %v599 = vor.u32 %v597, %v598
        %v600 = vshll.u32 920167782, %v585
        %v601 = vshrl.u32 1326507024, %v586
        %v602 = vor.u32 %v600, %v601
        %vm603 = vcmp.lt.s32.totalorder %v584, 1
        %vm604 = vcmp.lt.s32.totalorder %v584, 2
        %vm605 = vcmp.lt.s32.totalorder %v584, 3
        %vm606 = vcmp.lt.s32.totalorder %v584, 4
        %v607 = vsel %vm603, %v587, %v590
        %v608 = vsel %vm606, %v596, 2102212464
        %v609 = vsel %vm605, %v593, %v608
        %v610 = vsel %vm604, %v607, %v609
        %v611 = vsel %vm603, %v590, %v593
        %v612 = vsel %vm606, %v599, 920167782
        %v613 = vsel %vm605, %v596, %v612
        %v614 = vsel %vm604, %v611, %v613
        %v615 = vsel %vm603, %v593, %v596
        %v616 = vsel %vm606, %v602, 1326507024
        %v617 = vsel %vm605, %v599, %v616
        %v618 = vsel %vm604, %v615, %v617
        %v619 = vshll.u32 %v579, 8
        %v620 = vmul.u32.u64.compose %v619, %v618
        %v621 = vextract.low.u32 %v620
        %v622 = vextract.high.u32 %v620
        %v623 = vmul.u32.u64.compose %v619, %v614
        %v624 = vextract.low.u32 %v623
        %v625 = vextract.high.u32 %v623
        %v626 = vmul.u32 %v619, %v610
        %v627 = vadd.s32 %v622, %v624
        %vm628 = vc.u32 %v622, %v624
        %v629 = vadd.s32 %v625, 1
        %v630 = vsel %vm628, %v629, %v625
        %v631 = vadd.s32 %v626, %v630
        %v632 = vadd.s32 %v631, 536870912
        %v633 = vshrl.u32 %v632, 30
        %v634 = vshll.u32 %v633, 30
        %v635 = vsub.s32 %v631, %v634
        %vm636 = vcmp.lt.s32.totalorder %v635, 0
        %v637 = vsub.s32 0, %v635
        %v638 = vsel %vm636, %v637, %v635
        %v639 = vclz %v638
        %v640 = vsub.s32 %v639, 2
        %vm641 = vcmp.gt.s32.totalorder 0, %v640
        %v642 = vsel %vm641, 0, %v640
        %v643 = vsub.s32 32, %v642
        %v644 = vshll.u32 %v635, %v642
        %v645 = vshrl.u32 %v627, %v643
        %v646 = vor.u32 %v644, %v645
        %v647 = vsub.s32 4294967266, %v642
        %v648 = vadd.s32 %v647, 127
        %v649 = vshll.u32 %v648, 23
        %v650 = vor.u32 4788187, %v649
        %v651 = vand.u32 2147483647, %v650
        %v653 = vcvt.s32.f32 %v646
        %v654 = vmul.f32 %v653, %v651
        %v655 = vxor.u32 %v654, 2147483648
        %v656 = vsel %vm573, %v655, %v654
        %v657 = vsub.s32 4, %v633
        %v658 = vsel %vm573, %v657, %v633
        %v659 = vsel %vm572, %v553, %v656
        %v660 = vsel %vm572, 0, %v658
        %v661 = vcosq.f32.pop %v659
        %v662 = vsinq.f32.pop %v659
        %vm663 = vweird.f32 %v553
        %v664 = vadd.s32 %v660, 3
        %v665 = vand.u32 %v664, 3
        %vm666 = vcmp.lt.s32.totalorder %v665, 2
        %vm667 = vcmp.eq.s32.totalorder %v665, 0
        %v668 = vxor.u32 %v662, 2147483648
        %v669 = vsel %vm667, %v661, %v668
        %vm670 = vcmp.eq.s32.totalorder %v665, 2
        %v671 = vxor.u32 %v661, 2147483648
        %v672 = vsel %vm670, %v671, %v662
        %v673 = vsel %vm666, %v669, %v672
        %v674 = vsel %vm663, nan, %v673
        %v675 = vand.u32 2147483647, %v558
        %vm676 = vcmp.le.f32.partialorder %v675, 0.7853982
        %vm677 = vcmp.lt.s32.totalorder %v558, 0
        %v678 = vand.u32 %v558, 2139095040
        %v679 = vshrl.u32 %v678, 23
        %v680 = vsub.s32 %v679, 127
        %v681 = vand.u32 2147483647, %v558
        %v682 = vand.u32 %v681, 8388607
        %v683 = vor.u32 %v682, 8388608
        %v684 = vsub.s32 0, %v683
        %v685 = vadd.s32 %v680, 1
        %vm686 = vcmp.gt.s32.totalorder %v685, 0
        %v687 = vsel %vm686, %v685, 0
        %v688 = vshrl.u32 %v687, 5
        %v689 = vand.u32 %v687, 31
        %v690 = vsub.s32 32, %v689
        %v691 = vshrl.u32 683565275, %v690
        %v692 = vshll.u32 683565275, %v689
        %v693 = vshrl.u32 2475754826, %v690
        %v694 = vor.u32 %v692, %v693
        %v695 = vshll.u32 2475754826, %v689
        %v696 = vshrl.u32 2131351028, %v690
        %v697 = vor.u32 %v695, %v696
        %v698 = vshll.u32 2131351028, %v689
        %v699 = vshrl.u32 2102212464, %v690
        %v700 = vor.u32 %v698, %v699
        %v701 = vshll.u32 2102212464, %v689
        %v702 = vshrl.u32 920167782, %v690
        %v703 = vor.u32 %v701, %v702
        %v704 = vshll.u32 920167782, %v689
        %v705 = vshrl.u32 1326507024, %v690
        %v706 = vor.u32 %v704, %v705
        %vm707 = vcmp.lt.s32.totalorder %v688, 1
        %vm708 = vcmp.lt.s32.totalorder %v688, 2
        %vm709 = vcmp.lt.s32.totalorder %v688, 3
        %vm710 = vcmp.lt.s32.totalorder %v688, 4
        %v711 = vsel %vm707, %v691, %v694
        %v712 = vsel %vm710, %v700, 2102212464
        %v713 = vsel %vm709, %v697, %v712
        %v714 = vsel %vm708, %v711, %v713
        %v715 = vsel %vm707, %v694, %v697
        %v716 = vsel %vm710, %v703, 920167782
        %v717 = vsel %vm709, %v700, %v716
        %v718 = vsel %vm708, %v715, %v717
        %v719 = vsel %vm707, %v697, %v700
        %v720 = vsel %vm710, %v706, 1326507024
        %v721 = vsel %vm709, %v703, %v720
        %v722 = vsel %vm708, %v719, %v721
        %v723 = vshll.u32 %v683, 8
        %v724 = vmul.u32.u64.compose %v723, %v722
        %v725 = vextract.low.u32 %v724
        %v726 = vextract.high.u32 %v724
        %v727 = vmul.u32.u64.compose %v723, %v718
        %v728 = vextract.low.u32 %v727
        %v729 = vextract.high.u32 %v727
        %v730 = vmul.u32 %v723, %v714
        %v731 = vadd.s32 %v726, %v728
        %vm732 = vc.u32 %v726, %v728
        %v733 = vadd.s32 %v729, 1
        %v734 = vsel %vm732, %v733, %v729
        %v735 = vadd.s32 %v730, %v734
        %v736 = vadd.s32 %v735, 536870912
        %v737 = vshrl.u32 %v736, 30
        %v738 = vshll.u32 %v737, 30
        %v739 = vsub.s32 %v735, %v738
        %vm740 = vcmp.lt.s32.totalorder %v739, 0
        %v741 = vsub.s32 0, %v739
        %v742 = vsel %vm740, %v741, %v739
        %v743 = vclz %v742
        %v744 = vsub.s32 %v743, 2
        %vm745 = vcmp.gt.s32.totalorder 0, %v744
        %v746 = vsel %vm745, 0, %v744
        %v747 = vsub.s32 32, %v746
        %v748 = vshll.u32 %v739, %v746
        %v749 = vshrl.u32 %v731, %v747
        %v750 = vor.u32 %v748, %v749
        %v751 = vsub.s32 4294967266, %v746
        %v752 = vadd.s32 %v751, 127
        %v753 = vshll.u32 %v752, 23
        %v754 = vor.u32 4788187, %v753
        %v755 = vand.u32 2147483647, %v754
        %v757 = vcvt.s32.f32 %v750
        %v758 = vmul.f32 %v757, %v755
        %v759 = vxor.u32 %v758, 2147483648
        %v760 = vsel %vm677, %v759, %v758
        %v761 = vsub.s32 4, %v737
        %v762 = vsel %vm677, %v761, %v737
        %v763 = vsel %vm676, %v558, %v760
        %v764 = vsel %vm676, 0, %v762
        %v765 = vcosq.f32.pop %v763
        %v766 = vsinq.f32.pop %v763
        %vm767 = vweird.f32 %v558
        %v768 = vadd.s32 %v764, 3
        %v769 = vand.u32 %v768, 3
        %vm770 = vcmp.lt.s32.totalorder %v769, 2
        %vm771 = vcmp.eq.s32.totalorder %v769, 0
        %v772 = vxor.u32 %v766, 2147483648
        %v773 = vsel %vm771, %v765, %v772
        %vm774 = vcmp.eq.s32.totalorder %v769, 2
        %v775 = vxor.u32 %v765, 2147483648
        %v776 = vsel %vm774, %v775, %v766
        %v777 = vsel %vm770, %v773, %v776
        %v778 = vsel %vm767, nan, %v777
        %v779 = vand.u32 2147483647, %v563
        %vm780 = vcmp.le.f32.partialorder %v779, 0.7853982
        %vm781 = vcmp.lt.s32.totalorder %v563, 0
        %v782 = vand.u32 %v563, 2139095040
        %v783 = vshrl.u32 %v782, 23
        %v784 = vsub.s32 %v783, 127
        %v785 = vand.u32 2147483647, %v563
        %v786 = vand.u32 %v785, 8388607
        %v787 = vor.u32 %v786, 8388608
        %v788 = vsub.s32 0, %v787
        %v789 = vadd.s32 %v784, 1
        %vm790 = vcmp.gt.s32.totalorder %v789, 0
        %v791 = vsel %vm790, %v789, 0
        %v792 = vshrl.u32 %v791, 5
        %v793 = vand.u32 %v791, 31
        %v794 = vsub.s32 32, %v793
        %v795 = vshrl.u32 683565275, %v794
        %v796 = vshll.u32 683565275, %v793
        %v797 = vshrl.u32 2475754826, %v794
        %v798 = vor.u32 %v796, %v797
        %v799 = vshll.u32 2475754826, %v793
        %v800 = vshrl.u32 2131351028, %v794
        %v801 = vor.u32 %v799, %v800
        %v802 = vshll.u32 2131351028, %v793
        %v803 = vshrl.u32 2102212464, %v794
        %v804 = vor.u32 %v802, %v803
        %v805 = vshll.u32 2102212464, %v793
        %v806 = vshrl.u32 920167782, %v794
        %v807 = vor.u32 %v805, %v806
        %v808 = vshll.u32 920167782, %v793
        %v809 = vshrl.u32 1326507024, %v794
        %v810 = vor.u32 %v808, %v809
        %vm811 = vcmp.lt.s32.totalorder %v792, 1
        %vm812 = vcmp.lt.s32.totalorder %v792, 2
        %vm813 = vcmp.lt.s32.totalorder %v792, 3
        %vm814 = vcmp.lt.s32.totalorder %v792, 4
        %v815 = vsel %vm811, %v795, %v798
        %v816 = vsel %vm814, %v804, 2102212464
        %v817 = vsel %vm813, %v801, %v816
        %v818 = vsel %vm812, %v815, %v817
        %v819 = vsel %vm811, %v798, %v801
        %v820 = vsel %vm814, %v807, 920167782
        %v821 = vsel %vm813, %v804, %v820
        %v822 = vsel %vm812, %v819, %v821
        %v823 = vsel %vm811, %v801, %v804
        %v824 = vsel %vm814, %v810, 1326507024
        %v825 = vsel %vm813, %v807, %v824
        %v826 = vsel %vm812, %v823, %v825
        %v827 = vshll.u32 %v787, 8
        %v828 = vmul.u32.u64.compose %v827, %v826
        %v829 = vextract.low.u32 %v828
        %v830 = vextract.high.u32 %v828
        %v831 = vmul.u32.u64.compose %v827, %v822
        %v832 = vextract.low.u32 %v831
        %v833 = vextract.high.u32 %v831
        %v834 = vmul.u32 %v827, %v818
        %v835 = vadd.s32 %v830, %v832
        %vm836 = vc.u32 %v830, %v832
        %v837 = vadd.s32 %v833, 1
        %v838 = vsel %vm836, %v837, %v833
        %v839 = vadd.s32 %v834, %v838
        %v840 = vadd.s32 %v839, 536870912
        %v841 = vshrl.u32 %v840, 30
        %v842 = vshll.u32 %v841, 30
        %v843 = vsub.s32 %v839, %v842
        %vm844 = vcmp.lt.s32.totalorder %v843, 0
        %v845 = vsub.s32 0, %v843
        %v846 = vsel %vm844, %v845, %v843
        %v847 = vclz %v846
        %v848 = vsub.s32 %v847, 2
        %vm849 = vcmp.gt.s32.totalorder 0, %v848
        %v850 = vsel %vm849, 0, %v848
        %v851 = vsub.s32 32, %v850
        %v852 = vshll.u32 %v843, %v850
        %v853 = vshrl.u32 %v835, %v851
        %v854 = vor.u32 %v852, %v853
        %v855 = vsub.s32 4294967266, %v850
        %v856 = vadd.s32 %v855, 127
        %v857 = vshll.u32 %v856, 23
        %v858 = vor.u32 4788187, %v857
        %v859 = vand.u32 2147483647, %v858
        %v861 = vcvt.s32.f32 %v854
        %v862 = vmul.f32 %v861, %v859
        %v863 = vxor.u32 %v862, 2147483648
        %v864 = vsel %vm781, %v863, %v862
        %v865 = vsub.s32 4, %v841
        %v866 = vsel %vm781, %v865, %v841
        %v867 = vsel %vm780, %v563, %v864
        %v868 = vsel %vm780, 0, %v866
        %v869 = vcosq.f32.pop %v867
        %v870 = vsinq.f32.pop %v867
        %vm871 = vweird.f32 %v563
        %v872 = vadd.s32 %v868, 3
        %v873 = vand.u32 %v872, 3
        %vm874 = vcmp.lt.s32.totalorder %v873, 2
        %vm875 = vcmp.eq.s32.totalorder %v873, 0
        %v876 = vxor.u32 %v870, 2147483648
        %v877 = vsel %vm875, %v869, %v876
        %vm878 = vcmp.eq.s32.totalorder %v873, 2
        %v879 = vxor.u32 %v869, 2147483648
        %v880 = vsel %vm878, %v879, %v870
        %v881 = vsel %vm874, %v877, %v880
        %v882 = vsel %vm871, nan, %v881
        %v883 = vand.u32 2147483647, %v568
        %vm884 = vcmp.le.f32.partialorder %v883, 0.7853982
        %vm885 = vcmp.lt.s32.totalorder %v568, 0
        %v886 = vand.u32 %v568, 2139095040
        %v887 = vshrl.u32 %v886, 23
        %v888 = vsub.s32 %v887, 127
        %v889 = vand.u32 2147483647, %v568
        %v890 = vand.u32 %v889, 8388607
        %v891 = vor.u32 %v890, 8388608
        %v892 = vsub.s32 0, %v891
        %v893 = vadd.s32 %v888, 1
        %vm894 = vcmp.gt.s32.totalorder %v893, 0
        %v895 = vsel %vm894, %v893, 0
        %v896 = vshrl.u32 %v895, 5
        %v897 = vand.u32 %v895, 31
        %v898 = vsub.s32 32, %v897
        %v899 = vshrl.u32 683565275, %v898
        %v900 = vshll.u32 683565275, %v897
        %v901 = vshrl.u32 2475754826, %v898
        %v902 = vor.u32 %v900, %v901
        %v903 = vshll.u32 2475754826, %v897
        %v904 = vshrl.u32 2131351028, %v898
        %v905 = vor.u32 %v903, %v904
        %v906 = vshll.u32 2131351028, %v897
        %v907 = vshrl.u32 2102212464, %v898
        %v908 = vor.u32 %v906, %v907
        %v909 = vshll.u32 2102212464, %v897
        %v910 = vshrl.u32 920167782, %v898
        %v911 = vor.u32 %v909, %v910
        %v912 = vshll.u32 920167782, %v897
        %v913 = vshrl.u32 1326507024, %v898
        %v914 = vor.u32 %v912, %v913
        %vm915 = vcmp.lt.s32.totalorder %v896, 1
        %vm916 = vcmp.lt.s32.totalorder %v896, 2
        %vm917 = vcmp.lt.s32.totalorder %v896, 3
        %vm918 = vcmp.lt.s32.totalorder %v896, 4
        %v919 = vsel %vm915, %v899, %v902
        %v920 = vsel %vm918, %v908, 2102212464
        %v921 = vsel %vm917, %v905, %v920
        %v922 = vsel %vm916, %v919, %v921
        %v923 = vsel %vm915, %v902, %v905
        %v924 = vsel %vm918, %v911, 920167782
        %v925 = vsel %vm917, %v908, %v924
        %v926 = vsel %vm916, %v923, %v925
        %v927 = vsel %vm915, %v905, %v908
        %v928 = vsel %vm918, %v914, 1326507024
        %v929 = vsel %vm917, %v911, %v928
        %v930 = vsel %vm916, %v927, %v929
        %v931 = vshll.u32 %v891, 8
        %v932 = vmul.u32.u64.compose %v931, %v930
        %v933 = vextract.low.u32 %v932
        %v934 = vextract.high.u32 %v932
        %v935 = vmul.u32.u64.compose %v931, %v926
        %v936 = vextract.low.u32 %v935
        %v937 = vextract.high.u32 %v935
        %v938 = vmul.u32 %v931, %v922
        %v939 = vadd.s32 %v934, %v936
        %vm940 = vc.u32 %v934, %v936
        %v941 = vadd.s32 %v937, 1
        %v942 = vsel %vm940, %v941, %v937
        %v943 = vadd.s32 %v938, %v942
        %v944 = vadd.s32 %v943, 536870912
        %v945 = vshrl.u32 %v944, 30
        %v946 = vshll.u32 %v945, 30
        %v947 = vsub.s32 %v943, %v946
        %vm948 = vcmp.lt.s32.totalorder %v947, 0
        %v949 = vsub.s32 0, %v947
        %v950 = vsel %vm948, %v949, %v947
        %v951 = vclz %v950
        %v952 = vsub.s32 %v951, 2
        %vm953 = vcmp.gt.s32.totalorder 0, %v952
        %v954 = vsel %vm953, 0, %v952
        %v955 = vsub.s32 32, %v954
        %v956 = vshll.u32 %v947, %v954
        %v957 = vshrl.u32 %v939, %v955
        %v958 = vor.u32 %v956, %v957
        %v959 = vsub.s32 4294967266, %v954
        %v960 = vadd.s32 %v959, 127
        %v961 = vshll.u32 %v960, 23
        %v962 = vor.u32 4788187, %v961
        %v963 = vand.u32 2147483647, %v962
        %v965 = vcvt.s32.f32 %v958
        %v966 = vmul.f32 %v965, %v963
        %v967 = vxor.u32 %v966, 2147483648
        %v968 = vsel %vm885, %v967, %v966
        %v969 = vsub.s32 4, %v945
        %v970 = vsel %vm885, %v969, %v945
        %v971 = vsel %vm884, %v568, %v968
        %v972 = vsel %vm884, 0, %v970
        %v973 = vcosq.f32.pop %v971
        %v974 = vsinq.f32.pop %v971
        %vm975 = vweird.f32 %v568
        %v976 = vadd.s32 %v972, 3
        %v977 = vand.u32 %v976, 3
        %vm978 = vcmp.lt.s32.totalorder %v977, 2
        %vm979 = vcmp.eq.s32.totalorder %v977, 0
        %v980 = vxor.u32 %v974, 2147483648
        %v981 = vsel %vm979, %v973, %v980
        %vm982 = vcmp.eq.s32.totalorder %v977, 2
        %v983 = vxor.u32 %v973, 2147483648
        %v984 = vsel %vm982, %v983, %v974
        %v985 = vsel %vm978, %v981, %v984
        %v986 = vsel %vm975, nan, %v985
        %v987 = vld [vmem:[%s3] sm:$0xff]
        %v988 = vld [vmem:[%s3 + $0x8] sm:$0xff]
        %v989 = vld [vmem:[%s3 + $0x10] sm:$0xff]
        %v990 = vld [vmem:[%s3 + $0x18] sm:$0xff]
        %v991 = vld [vmem:[%s4] sm:$0xff]
        %v992 = vld [vmem:[%s4 + $0x8] sm:$0xff]
        %v993 = vld [vmem:[%s4 + $0x10] sm:$0xff]
        %v994 = vld [vmem:[%s4 + $0x18] sm:$0xff]
        %996 = vset.pattern.permute.xlu0 0
        %997 = vperm.xlu0 %996, %v991
        %v998 = vpop.permute.xlu0 %997
        %1001 = vset.pattern.permute.xlu0 0
        %1002 = vperm.xlu0 %1001, %v992
        %v1003 = vpop.permute.xlu0 %1002
        %1006 = vset.pattern.permute.xlu0 0
        %1007 = vperm.xlu0 %1006, %v993
        %v1008 = vpop.permute.xlu0 %1007
        %1011 = vset.pattern.permute.xlu0 0
        %1012 = vperm.xlu0 %1011, %v994
        %v1013 = vpop.permute.xlu0 %1012
        %vm1015 = vcmask 261120
        %v1017 = vsel %vm1015, %v987, 0
        %v1020 = vsel %vm1015, %v988, 0
        %v1023 = vsel %vm1015, %v989, 0
        %v1026 = vsel %vm1015, %v990, 0
        %1028 = vmatprep.subr.mxu0 0.0
        %1029 = vmatpush1.msra.mxu0 %v674
        %1030 = vmatprep.subr.mxu0 0.0
        %1031 = vmatpush1.msra.mxu0 %v778
        %1032 = vmatprep.subr.mxu0 0.0
        %1033 = vmatpush1.msra.mxu0 %v882
        %1034 = vmatprep.subr.mxu0 0.0
        %1035 = vmatpush1.msra.mxu0 %v986
        %1036 = vmatprep.subr.mxu0 0.0
        %1037 = vmatpush1.msra.mxu0 0.0
        %1038 = vmatprep.subr.mxu0 0.0
        %1039 = vmatpush1.msra.mxu0 0.0
        %1040 = vmatprep.subr.mxu0 0.0
        %1041 = vmatpush1.msra.mxu0 0.0
        %1042 = vmatprep.subr.mxu0 0.0
        %1043 = vmatpush1.msra.mxu0 0.0
        %1044 = vmatprep.subr.mxu0 0.0
        %1045 = vmatpush1.msra.mxu0 0.0
        %1046 = vmatprep.subr.mxu0 0.0
        %1047 = vmatpush1.msra.mxu0 0.0
        %1048 = vmatprep.subr.mxu0 0.0
        %1049 = vmatpush1.msra.mxu0 0.0
        %1050 = vmatprep.subr.mxu0 0.0
        %1051 = vmatpush1.msra.mxu0 0.0
        %1052 = vmatprep.subr.mxu0 0.0
        %1053 = vmatpush1.msra.mxu0 0.0
        %1054 = vmatprep.subr.mxu0 0.0
        %1055 = vmatpush1.msra.mxu0 0.0
        %1056 = vmatprep.subr.mxu0 0.0
        %1057 = vmatpush1.msra.mxu0 0.0
        %1058 = vmatprep.subr.mxu0 0.0
        %1059 = vmatpush1.msra.mxu0 0.0
        %1060 = vmatprep.subr.mxu0 0.0
        %1061 = vmatpush1.msra.mxu0 0.0
        %1062 = vmatprep.subr.mxu0 0.0
        %1063 = vmatpush1.msra.mxu0 0.0
        %1064 = vmatprep.subr.mxu0 0.0
        %1065 = vmatpush1.msra.mxu0 0.0
        %1066 = vmatprep.subr.mxu0 0.0
        %1067 = vmatpush1.msra.mxu0 0.0
        %1068 = vmatprep.subr.mxu0 0.0
        %1069 = vmatpush1.msra.mxu0 0.0
        %1070 = vmatprep.subr.mxu0 0.0
        %1071 = vmatpush1.msra.mxu0 0.0
        %1072 = vmatprep.subr.mxu0 0.0
        %1073 = vmatpush1.msra.mxu0 0.0
        %1074 = vmatprep.subr.mxu0 0.0
        %1075 = vmatpush1.msra.mxu0 0.0
        %1076 = vmatprep.subr.mxu0 0.0
        %1077 = vmatpush1.msra.mxu0 0.0
        %1078 = vmatprep.subr.mxu0 0.0
        %1079 = vmatpush1.msra.mxu0 0.0
        %1080 = vmatprep.subr.mxu0 0.0
        %1081 = vmatpush1.msra.mxu0 0.0
        %1082 = vmatprep.subr.mxu0 0.0
        %1083 = vmatpush1.msra.mxu0 0.0
        %1084 = vmatprep.subr.mxu0 0.0
        %1085 = vmatpush1.msra.mxu0 0.0
        %1086 = vmatprep.subr.mxu0 0.0
        %1087 = vmatpush1.msra.mxu0 0.0
        %1088 = vmatprep.subr.mxu0 0.0
        %1089 = vmatpush1.msra.mxu0 0.0
        %1090 = vmatprep.subr.mxu0 0.0
        %1091 = vmatpush1.msra.mxu0 0.0
        %1092 = vmatprep.mubr.f32.mxu0 0.0
        %1093 = vmatmul.mubr.f32.gmra.mrb[0].mxu0 %v1017
        %v1094 = vpop.f32.mrb[0].mxu0
        %v1095 = vadd.f32 %v998, %v1094
        %v1096 = vpop.f32.mrb[0].mxu0
        %1097 = vmatprep.mubr.f32.mxu0 0.0
        %1098 = vmatmul.mubr.f32.gmra.mrb[0].mxu0 %v1020
        %v1099 = vpop.f32.mrb[0].mxu0
        %v1100 = vadd.f32 %v1003, %v1099
        %v1101 = vpop.f32.mrb[0].mxu0
        %1102 = vmatprep.mubr.f32.mxu0 0.0
        %1103 = vmatmul.mubr.f32.gmra.mrb[0].mxu0 %v1023
        %v1104 = vpop.f32.mrb[0].mxu0
        %v1105 = vadd.f32 %v1008, %v1104
        %v1106 = vpop.f32.mrb[0].mxu0
        %1107 = vmatprep.mubr.f32.mxu0 0.0
        %1108 = vmatmul.mubr.f32.gmra.mrb[0].mxu0 %v1026
        %v1109 = vpop.f32.mrb[0].mxu0
        %v1110 = vadd.f32 %v1013, %v1109
        %v1111 = vpop.f32.mrb[0].mxu0
        %1112 = vdwg.mxu0
        %v1113 = vand.u32 2147483647, %v1095
        %vm1114 = vcmp.le.f32.partialorder %v1113, 0.7853982
        %vm1115 = vcmp.lt.s32.totalorder %v1095, 0
        %v1116 = vand.u32 %v1095, 2139095040
        %v1117 = vshrl.u32 %v1116, 23
        %v1118 = vsub.s32 %v1117, 127
        %v1119 = vand.u32 2147483647, %v1095
        %v1120 = vand.u32 %v1119, 8388607
        %v1121 = vor.u32 %v1120, 8388608
        %v1122 = vsub.s32 0, %v1121
        %v1123 = vadd.s32 %v1118, 1
        %vm1124 = vcmp.gt.s32.totalorder %v1123, 0
        %v1125 = vsel %vm1124, %v1123, 0
        %v1126 = vshrl.u32 %v1125, 5
        %v1127 = vand.u32 %v1125, 31
        %v1128 = vsub.s32 32, %v1127
        %v1129 = vshrl.u32 683565275, %v1128
        %v1130 = vshll.u32 683565275, %v1127
        %v1131 = vshrl.u32 2475754826, %v1128
        %v1132 = vor.u32 %v1130, %v1131
        %v1133 = vshll.u32 2475754826, %v1127
        %v1134 = vshrl.u32 2131351028, %v1128
        %v1135 = vor.u32 %v1133, %v1134
        %v1136 = vshll.u32 2131351028, %v1127
        %v1137 = vshrl.u32 2102212464, %v1128
        %v1138 = vor.u32 %v1136, %v1137
        %v1139 = vshll.u32 2102212464, %v1127
        %v1140 = vshrl.u32 920167782, %v1128
        %v1141 = vor.u32 %v1139, %v1140
        %v1142 = vshll.u32 920167782, %v1127
        %v1143 = vshrl.u32 1326507024, %v1128
        %v1144 = vor.u32 %v1142, %v1143
        %vm1145 = vcmp.lt.s32.totalorder %v1126, 1
        %vm1146 = vcmp.lt.s32.totalorder %v1126, 2
        %vm1147 = vcmp.lt.s32.totalorder %v1126, 3
        %vm1148 = vcmp.lt.s32.totalorder %v1126, 4
        %v1149 = vsel %vm1145, %v1129, %v1132
        %v1150 = vsel %vm1148, %v1138, 2102212464
        %v1151 = vsel %vm1147, %v1135, %v1150
        %v1152 = vsel %vm1146, %v1149, %v1151
        %v1153 = vsel %vm1145, %v1132, %v1135
        %v1154 = vsel %vm1148, %v1141, 920167782
        %v1155 = vsel %vm1147, %v1138, %v1154
        %v1156 = vsel %vm1146, %v1153, %v1155
        %v1157 = vsel %vm1145, %v1135, %v1138
        %v1158 = vsel %vm1148, %v1144, 1326507024
        %v1159 = vsel %vm1147, %v1141, %v1158
        %v1160 = vsel %vm1146, %v1157, %v1159
        %v1161 = vshll.u32 %v1121, 8
        %v1162 = vmul.u32.u64.compose %v1161, %v1160
        %v1163 = vextract.low.u32 %v1162
        %v1164 = vextract.high.u32 %v1162
        %v1165 = vmul.u32.u64.compose %v1161, %v1156
        %v1166 = vextract.low.u32 %v1165
        %v1167 = vextract.high.u32 %v1165
        %v1168 = vmul.u32 %v1161, %v1152
        %v1169 = vadd.s32 %v1164, %v1166
        %vm1170 = vc.u32 %v1164, %v1166
        %v1171 = vadd.s32 %v1167, 1
        %v1172 = vsel %vm1170, %v1171, %v1167
        %v1173 = vadd.s32 %v1168, %v1172
        %v1174 = vadd.s32 %v1173, 536870912
        %v1175 = vshrl.u32 %v1174, 30
        %v1176 = vshll.u32 %v1175, 30
        %v1177 = vsub.s32 %v1173, %v1176
        %vm1178 = vcmp.lt.s32.totalorder %v1177, 0
        %v1179 = vsub.s32 0, %v1177
        %v1180 = vsel %vm1178, %v1179, %v1177
        %v1181 = vclz %v1180
        %v1182 = vsub.s32 %v1181, 2
        %vm1183 = vcmp.gt.s32.totalorder 0, %v1182
        %v1184 = vsel %vm1183, 0, %v1182
        %v1185 = vsub.s32 32, %v1184
        %v1186 = vshll.u32 %v1177, %v1184
        %v1187 = vshrl.u32 %v1169, %v1185
        %v1188 = vor.u32 %v1186, %v1187
        %v1189 = vsub.s32 4294967266, %v1184
        %v1190 = vadd.s32 %v1189, 127
        %v1191 = vshll.u32 %v1190, 23
        %v1192 = vor.u32 4788187, %v1191
        %v1193 = vand.u32 2147483647, %v1192
        %v1195 = vcvt.s32.f32 %v1188
        %v1196 = vmul.f32 %v1195, %v1193
        %v1197 = vxor.u32 %v1196, 2147483648
        %v1198 = vsel %vm1115, %v1197, %v1196
        %v1199 = vsub.s32 4, %v1175
        %v1200 = vsel %vm1115, %v1199, %v1175
        %v1201 = vsel %vm1114, %v1095, %v1198
        %v1202 = vsel %vm1114, 0, %v1200
        %v1203 = vcosq.f32.pop %v1201
        %v1204 = vsinq.f32.pop %v1201
        %vm1205 = vweird.f32 %v1095
        %v1206 = vadd.s32 %v1202, 3
        %v1207 = vand.u32 %v1206, 3
        %vm1208 = vcmp.lt.s32.totalorder %v1207, 2
        %vm1209 = vcmp.eq.s32.totalorder %v1207, 0
        %v1210 = vxor.u32 %v1204, 2147483648
        %v1211 = vsel %vm1209, %v1203, %v1210
        %vm1212 = vcmp.eq.s32.totalorder %v1207, 2
        %v1213 = vxor.u32 %v1203, 2147483648
        %v1214 = vsel %vm1212, %v1213, %v1204
        %v1215 = vsel %vm1208, %v1211, %v1214
        %v1216 = vsel %vm1205, nan, %v1215
        %v1217 = vand.u32 2147483647, %v1100
        %vm1218 = vcmp.le.f32.partialorder %v1217, 0.7853982
        %vm1219 = vcmp.lt.s32.totalorder %v1100, 0
        %v1220 = vand.u32 %v1100, 2139095040
        %v1221 = vshrl.u32 %v1220, 23
        %v1222 = vsub.s32 %v1221, 127
        %v1223 = vand.u32 2147483647, %v1100
        %v1224 = vand.u32 %v1223, 8388607
        %v1225 = vor.u32 %v1224, 8388608
        %v1226 = vsub.s32 0, %v1225
        %v1227 = vadd.s32 %v1222, 1
        %vm1228 = vcmp.gt.s32.totalorder %v1227, 0
        %v1229 = vsel %vm1228, %v1227, 0
        %v1230 = vshrl.u32 %v1229, 5
        %v1231 = vand.u32 %v1229, 31
        %v1232 = vsub.s32 32, %v1231
        %v1233 = vshrl.u32 683565275, %v1232
        %v1234 = vshll.u32 683565275, %v1231
        %v1235 = vshrl.u32 2475754826, %v1232
        %v1236 = vor.u32 %v1234, %v1235
        %v1237 = vshll.u32 2475754826, %v1231
        %v1238 = vshrl.u32 2131351028, %v1232
        %v1239 = vor.u32 %v1237, %v1238
        %v1240 = vshll.u32 2131351028, %v1231
        %v1241 = vshrl.u32 2102212464, %v1232
        %v1242 = vor.u32 %v1240, %v1241
        %v1243 = vshll.u32 2102212464, %v1231
        %v1244 = vshrl.u32 920167782, %v1232
        %v1245 = vor.u32 %v1243, %v1244
        %v1246 = vshll.u32 920167782, %v1231
        %v1247 = vshrl.u32 1326507024, %v1232
        %v1248 = vor.u32 %v1246, %v1247
        %vm1249 = vcmp.lt.s32.totalorder %v1230, 1
        %vm1250 = vcmp.lt.s32.totalorder %v1230, 2
        %vm1251 = vcmp.lt.s32.totalorder %v1230, 3
        %vm1252 = vcmp.lt.s32.totalorder %v1230, 4
        %v1253 = vsel %vm1249, %v1233, %v1236
        %v1254 = vsel %vm1252, %v1242, 2102212464
        %v1255 = vsel %vm1251, %v1239, %v1254
        %v1256 = vsel %vm1250, %v1253, %v1255
        %v1257 = vsel %vm1249, %v1236, %v1239
        %v1258 = vsel %vm1252, %v1245, 920167782
        %v1259 = vsel %vm1251, %v1242, %v1258
        %v1260 = vsel %vm1250, %v1257, %v1259
        %v1261 = vsel %vm1249, %v1239, %v1242
        %v1262 = vsel %vm1252, %v1248, 1326507024
        %v1263 = vsel %vm1251, %v1245, %v1262
        %v1264 = vsel %vm1250, %v1261, %v1263
        %v1265 = vshll.u32 %v1225, 8
        %v1266 = vmul.u32.u64.compose %v1265, %v1264
        %v1267 = vextract.low.u32 %v1266
        %v1268 = vextract.high.u32 %v1266
        %v1269 = vmul.u32.u64.compose %v1265, %v1260
        %v1270 = vextract.low.u32 %v1269
        %v1271 = vextract.high.u32 %v1269
        %v1272 = vmul.u32 %v1265, %v1256
        %v1273 = vadd.s32 %v1268, %v1270
        %vm1274 = vc.u32 %v1268, %v1270
        %v1275 = vadd.s32 %v1271, 1
        %v1276 = vsel %vm1274, %v1275, %v1271
        %v1277 = vadd.s32 %v1272, %v1276
        %v1278 = vadd.s32 %v1277, 536870912
        %v1279 = vshrl.u32 %v1278, 30
        %v1280 = vshll.u32 %v1279, 30
        %v1281 = vsub.s32 %v1277, %v1280
        %vm1282 = vcmp.lt.s32.totalorder %v1281, 0
        %v1283 = vsub.s32 0, %v1281
        %v1284 = vsel %vm1282, %v1283, %v1281
        %v1285 = vclz %v1284
        %v1286 = vsub.s32 %v1285, 2
        %vm1287 = vcmp.gt.s32.totalorder 0, %v1286
        %v1288 = vsel %vm1287, 0, %v1286
        %v1289 = vsub.s32 32, %v1288
        %v1290 = vshll.u32 %v1281, %v1288
        %v1291 = vshrl.u32 %v1273, %v1289
        %v1292 = vor.u32 %v1290, %v1291
        %v1293 = vsub.s32 4294967266, %v1288
        %v1294 = vadd.s32 %v1293, 127
        %v1295 = vshll.u32 %v1294, 23
        %v1296 = vor.u32 4788187, %v1295
        %v1297 = vand.u32 2147483647, %v1296
        %v1299 = vcvt.s32.f32 %v1292
        %v1300 = vmul.f32 %v1299, %v1297
        %v1301 = vxor.u32 %v1300, 2147483648
        %v1302 = vsel %vm1219, %v1301, %v1300
        %v1303 = vsub.s32 4, %v1279
        %v1304 = vsel %vm1219, %v1303, %v1279
        %v1305 = vsel %vm1218, %v1100, %v1302
        %v1306 = vsel %vm1218, 0, %v1304
        %v1307 = vcosq.f32.pop %v1305
        %v1308 = vsinq.f32.pop %v1305
        %vm1309 = vweird.f32 %v1100
        %v1310 = vadd.s32 %v1306, 3
        %v1311 = vand.u32 %v1310, 3
        %vm1312 = vcmp.lt.s32.totalorder %v1311, 2
        %vm1313 = vcmp.eq.s32.totalorder %v1311, 0
        %v1314 = vxor.u32 %v1308, 2147483648
        %v1315 = vsel %vm1313, %v1307, %v1314
        %vm1316 = vcmp.eq.s32.totalorder %v1311, 2
        %v1317 = vxor.u32 %v1307, 2147483648
        %v1318 = vsel %vm1316, %v1317, %v1308
        %v1319 = vsel %vm1312, %v1315, %v1318
        %v1320 = vsel %vm1309, nan, %v1319
        %v1321 = vand.u32 2147483647, %v1105
        %vm1322 = vcmp.le.f32.partialorder %v1321, 0.7853982
        %vm1323 = vcmp.lt.s32.totalorder %v1105, 0
        %v1324 = vand.u32 %v1105, 2139095040
        %v1325 = vshrl.u32 %v1324, 23
        %v1326 = vsub.s32 %v1325, 127
        %v1327 = vand.u32 2147483647, %v1105
        %v1328 = vand.u32 %v1327, 8388607
        %v1329 = vor.u32 %v1328, 8388608
        %v1330 = vsub.s32 0, %v1329
        %v1331 = vadd.s32 %v1326, 1
        %vm1332 = vcmp.gt.s32.totalorder %v1331, 0
        %v1333 = vsel %vm1332, %v1331, 0
        %v1334 = vshrl.u32 %v1333, 5
        %v1335 = vand.u32 %v1333, 31
        %v1336 = vsub.s32 32, %v1335
        %v1337 = vshrl.u32 683565275, %v1336
        %v1338 = vshll.u32 683565275, %v1335
        %v1339 = vshrl.u32 2475754826, %v1336
        %v1340 = vor.u32 %v1338, %v1339
        %v1341 = vshll.u32 2475754826, %v1335
        %v1342 = vshrl.u32 2131351028, %v1336
        %v1343 = vor.u32 %v1341, %v1342
        %v1344 = vshll.u32 2131351028, %v1335
        %v1345 = vshrl.u32 2102212464, %v1336
        %v1346 = vor.u32 %v1344, %v1345
        %v1347 = vshll.u32 2102212464, %v1335
        %v1348 = vshrl.u32 920167782, %v1336
        %v1349 = vor.u32 %v1347, %v1348
        %v1350 = vshll.u32 920167782, %v1335
        %v1351 = vshrl.u32 1326507024, %v1336
        %v1352 = vor.u32 %v1350, %v1351
        %vm1353 = vcmp.lt.s32.totalorder %v1334, 1
        %vm1354 = vcmp.lt.s32.totalorder %v1334, 2
        %vm1355 = vcmp.lt.s32.totalorder %v1334, 3
        %vm1356 = vcmp.lt.s32.totalorder %v1334, 4
        %v1357 = vsel %vm1353, %v1337, %v1340
        %v1358 = vsel %vm1356, %v1346, 2102212464
        %v1359 = vsel %vm1355, %v1343, %v1358
        %v1360 = vsel %vm1354, %v1357, %v1359
        %v1361 = vsel %vm1353, %v1340, %v1343
        %v1362 = vsel %vm1356, %v1349, 920167782
        %v1363 = vsel %vm1355, %v1346, %v1362
        %v1364 = vsel %vm1354, %v1361, %v1363
        %v1365 = vsel %vm1353, %v1343, %v1346
        %v1366 = vsel %vm1356, %v1352, 1326507024
        %v1367 = vsel %vm1355, %v1349, %v1366
        %v1368 = vsel %vm1354, %v1365, %v1367
        %v1369 = vshll.u32 %v1329, 8
        %v1370 = vmul.u32.u64.compose %v1369, %v1368
        %v1371 = vextract.low.u32 %v1370
        %v1372 = vextract.high.u32 %v1370
        %v1373 = vmul.u32.u64.compose %v1369, %v1364
        %v1374 = vextract.low.u32 %v1373
        %v1375 = vextract.high.u32 %v1373
        %v1376 = vmul.u32 %v1369, %v1360
        %v1377 = vadd.s32 %v1372, %v1374
        %vm1378 = vc.u32 %v1372, %v1374
        %v1379 = vadd.s32 %v1375, 1
        %v1380 = vsel %vm1378, %v1379, %v1375
        %v1381 = vadd.s32 %v1376, %v1380
        %v1382 = vadd.s32 %v1381, 536870912
        %v1383 = vshrl.u32 %v1382, 30
        %v1384 = vshll.u32 %v1383, 30
        %v1385 = vsub.s32 %v1381, %v1384
        %vm1386 = vcmp.lt.s32.totalorder %v1385, 0
        %v1387 = vsub.s32 0, %v1385
        %v1388 = vsel %vm1386, %v1387, %v1385
        %v1389 = vclz %v1388
        %v1390 = vsub.s32 %v1389, 2
        %vm1391 = vcmp.gt.s32.totalorder 0, %v1390
        %v1392 = vsel %vm1391, 0, %v1390
        %v1393 = vsub.s32 32, %v1392
        %v1394 = vshll.u32 %v1385, %v1392
        %v1395 = vshrl.u32 %v1377, %v1393
        %v1396 = vor.u32 %v1394, %v1395
        %v1397 = vsub.s32 4294967266, %v1392
        %v1398 = vadd.s32 %v1397, 127
        %v1399 = vshll.u32 %v1398, 23
        %v1400 = vor.u32 4788187, %v1399
        %v1401 = vand.u32 2147483647, %v1400
        %v1403 = vcvt.s32.f32 %v1396
        %v1404 = vmul.f32 %v1403, %v1401
        %v1405 = vxor.u32 %v1404, 2147483648
        %v1406 = vsel %vm1323, %v1405, %v1404
        %v1407 = vsub.s32 4, %v1383
        %v1408 = vsel %vm1323, %v1407, %v1383
        %v1409 = vsel %vm1322, %v1105, %v1406
        %v1410 = vsel %vm1322, 0, %v1408
        %v1411 = vcosq.f32.pop %v1409
        %v1412 = vsinq.f32.pop %v1409
        %vm1413 = vweird.f32 %v1105
        %v1414 = vadd.s32 %v1410, 3
        %v1415 = vand.u32 %v1414, 3
        %vm1416 = vcmp.lt.s32.totalorder %v1415, 2
        %vm1417 = vcmp.eq.s32.totalorder %v1415, 0
        %v1418 = vxor.u32 %v1412, 2147483648
        %v1419 = vsel %vm1417, %v1411, %v1418
        %vm1420 = vcmp.eq.s32.totalorder %v1415, 2
        %v1421 = vxor.u32 %v1411, 2147483648
        %v1422 = vsel %vm1420, %v1421, %v1412
        %v1423 = vsel %vm1416, %v1419, %v1422
        %v1424 = vsel %vm1413, nan, %v1423
        %v1425 = vand.u32 2147483647, %v1110
        %vm1426 = vcmp.le.f32.partialorder %v1425, 0.7853982
        %vm1427 = vcmp.lt.s32.totalorder %v1110, 0
        %v1428 = vand.u32 %v1110, 2139095040
        %v1429 = vshrl.u32 %v1428, 23
        %v1430 = vsub.s32 %v1429, 127
        %v1431 = vand.u32 2147483647, %v1110
        %v1432 = vand.u32 %v1431, 8388607
        %v1433 = vor.u32 %v1432, 8388608
        %v1434 = vsub.s32 0, %v1433
        %v1435 = vadd.s32 %v1430, 1
        %vm1436 = vcmp.gt.s32.totalorder %v1435, 0
        %v1437 = vsel %vm1436, %v1435, 0
        %v1438 = vshrl.u32 %v1437, 5
        %v1439 = vand.u32 %v1437, 31
        %v1440 = vsub.s32 32, %v1439
        %v1441 = vshrl.u32 683565275, %v1440
        %v1442 = vshll.u32 683565275, %v1439
        %v1443 = vshrl.u32 2475754826, %v1440
        %v1444 = vor.u32 %v1442, %v1443
        %v1445 = vshll.u32 2475754826, %v1439
        %v1446 = vshrl.u32 2131351028, %v1440
        %v1447 = vor.u32 %v1445, %v1446
        %v1448 = vshll.u32 2131351028, %v1439
        %v1449 = vshrl.u32 2102212464, %v1440
        %v1450 = vor.u32 %v1448, %v1449
        %v1451 = vshll.u32 2102212464, %v1439
        %v1452 = vshrl.u32 920167782, %v1440
        %v1453 = vor.u32 %v1451, %v1452
        %v1454 = vshll.u32 920167782, %v1439
        %v1455 = vshrl.u32 1326507024, %v1440
        %v1456 = vor.u32 %v1454, %v1455
        %vm1457 = vcmp.lt.s32.totalorder %v1438, 1
        %vm1458 = vcmp.lt.s32.totalorder %v1438, 2
        %vm1459 = vcmp.lt.s32.totalorder %v1438, 3
        %vm1460 = vcmp.lt.s32.totalorder %v1438, 4
        %v1461 = vsel %vm1457, %v1441, %v1444
        %v1462 = vsel %vm1460, %v1450, 2102212464
        %v1463 = vsel %vm1459, %v1447, %v1462
        %v1464 = vsel %vm1458, %v1461, %v1463
        %v1465 = vsel %vm1457, %v1444, %v1447
        %v1466 = vsel %vm1460, %v1453, 920167782
        %v1467 = vsel %vm1459, %v1450, %v1466
        %v1468 = vsel %vm1458, %v1465, %v1467
        %v1469 = vsel %vm1457, %v1447, %v1450
        %v1470 = vsel %vm1460, %v1456, 1326507024
        %v1471 = vsel %vm1459, %v1453, %v1470
        %v1472 = vsel %vm1458, %v1469, %v1471
        %v1473 = vshll.u32 %v1433, 8
        %v1474 = vmul.u32.u64.compose %v1473, %v1472
        %v1475 = vextract.low.u32 %v1474
        %v1476 = vextract.high.u32 %v1474
        %v1477 = vmul.u32.u64.compose %v1473, %v1468
        %v1478 = vextract.low.u32 %v1477
        %v1479 = vextract.high.u32 %v1477
        %v1480 = vmul.u32 %v1473, %v1464
        %v1481 = vadd.s32 %v1476, %v1478
        %vm1482 = vc.u32 %v1476, %v1478
        %v1483 = vadd.s32 %v1479, 1
        %v1484 = vsel %vm1482, %v1483, %v1479
        %v1485 = vadd.s32 %v1480, %v1484
        %v1486 = vadd.s32 %v1485, 536870912
        %v1487 = vshrl.u32 %v1486, 30
        %v1488 = vshll.u32 %v1487, 30
        %v1489 = vsub.s32 %v1485, %v1488
        %vm1490 = vcmp.lt.s32.totalorder %v1489, 0
        %v1491 = vsub.s32 0, %v1489
        %v1492 = vsel %vm1490, %v1491, %v1489
        %v1493 = vclz %v1492
        %v1494 = vsub.s32 %v1493, 2
        %vm1495 = vcmp.gt.s32.totalorder 0, %v1494
        %v1496 = vsel %vm1495, 0, %v1494
        %v1497 = vsub.s32 32, %v1496
        %v1498 = vshll.u32 %v1489, %v1496
        %v1499 = vshrl.u32 %v1481, %v1497
        %v1500 = vor.u32 %v1498, %v1499
        %v1501 = vsub.s32 4294967266, %v1496
        %v1502 = vadd.s32 %v1501, 127
        %v1503 = vshll.u32 %v1502, 23
        %v1504 = vor.u32 4788187, %v1503
        %v1505 = vand.u32 2147483647, %v1504
        %v1507 = vcvt.s32.f32 %v1500
        %v1508 = vmul.f32 %v1507, %v1505
        %v1509 = vxor.u32 %v1508, 2147483648
        %v1510 = vsel %vm1427, %v1509, %v1508
        %v1511 = vsub.s32 4, %v1487
        %v1512 = vsel %vm1427, %v1511, %v1487
        %v1513 = vsel %vm1426, %v1110, %v1510
        %v1514 = vsel %vm1426, 0, %v1512
        %v1515 = vcosq.f32.pop %v1513
        %v1516 = vsinq.f32.pop %v1513
        %vm1517 = vweird.f32 %v1110
        %v1518 = vadd.s32 %v1514, 3
        %v1519 = vand.u32 %v1518, 3
        %vm1520 = vcmp.lt.s32.totalorder %v1519, 2
        %vm1521 = vcmp.eq.s32.totalorder %v1519, 0
        %v1522 = vxor.u32 %v1516, 2147483648
        %v1523 = vsel %vm1521, %v1515, %v1522
        %vm1524 = vcmp.eq.s32.totalorder %v1519, 2
        %v1525 = vxor.u32 %v1515, 2147483648
        %v1526 = vsel %vm1524, %v1525, %v1516
        %v1527 = vsel %vm1520, %v1523, %v1526
        %v1528 = vsel %vm1517, nan, %v1527
        %v1529 = vld [vmem:[%s5] sm:$0x1]
        %v1530 = vld [vmem:[#allocation2] sm:$0x1]
        %1532 = vset.pattern.permute.xlu0 0
        %1533 = vperm.xlu0 %1532, %v1530
        %v1534 = vpop.permute.xlu0 %1533
        %v1536 = vlaneseq
        %v1537 = vshrl.u32 %v1536, 7
        %v1538 = vsub.s32 0, %v1537
        %v1539 = vrot.slane %v1534, %v1538
        %v1541 = vsel %vm1015, %v1529, 0
        %1543 = vmatprep.subr.mxu0 0.0
        %1544 = vmatpush1.msra.mxu0 %v1216
        %1545 = vmatprep.subr.mxu0 0.0
        %1546 = vmatpush1.msra.mxu0 %v1320
        %1547 = vmatprep.subr.mxu0 0.0
        %1548 = vmatpush1.msra.mxu0 %v1424
        %1549 = vmatprep.subr.mxu0 0.0
        %1550 = vmatpush1.msra.mxu0 %v1528
        %1551 = vmatprep.subr.mxu0 0.0
        %1552 = vmatpush1.msra.mxu0 0.0
        %1553 = vmatprep.subr.mxu0 0.0
        %1554 = vmatpush1.msra.mxu0 0.0
        %1555 = vmatprep.subr.mxu0 0.0
        %1556 = vmatpush1.msra.mxu0 0.0
        %1557 = vmatprep.subr.mxu0 0.0
        %1558 = vmatpush1.msra.mxu0 0.0
        %1559 = vmatprep.subr.mxu0 0.0
        %1560 = vmatpush1.msra.mxu0 0.0
        %1561 = vmatprep.subr.mxu0 0.0
        %1562 = vmatpush1.msra.mxu0 0.0
        %1563 = vmatprep.subr.mxu0 0.0
        %1564 = vmatpush1.msra.mxu0 0.0
        %1565 = vmatprep.subr.mxu0 0.0
        %1566 = vmatpush1.msra.mxu0 0.0
        %1567 = vmatprep.subr.mxu0 0.0
        %1568 = vmatpush1.msra.mxu0 0.0
        %1569 = vmatprep.subr.mxu0 0.0
        %1570 = vmatpush1.msra.mxu0 0.0
        %1571 = vmatprep.subr.mxu0 0.0
        %1572 = vmatpush1.msra.mxu0 0.0
        %1573 = vmatprep.subr.mxu0 0.0
        %1574 = vmatpush1.msra.mxu0 0.0
        %1575 = vmatprep.subr.mxu0 0.0
        %1576 = vmatpush1.msra.mxu0 0.0
        %1577 = vmatprep.subr.mxu0 0.0
        %1578 = vmatpush1.msra.mxu0 0.0
        %1579 = vmatprep.subr.mxu0 0.0
        %1580 = vmatpush1.msra.mxu0 0.0
        %1581 = vmatprep.subr.mxu0 0.0
        %1582 = vmatpush1.msra.mxu0 0.0
        %1583 = vmatprep.subr.mxu0 0.0
        %1584 = vmatpush1.msra.mxu0 0.0
        %1585 = vmatprep.subr.mxu0 0.0
        %1586 = vmatpush1.msra.mxu0 0.0
        %1587 = vmatprep.subr.mxu0 0.0
        %1588 = vmatpush1.msra.mxu0 0.0
        %1589 = vmatprep.subr.mxu0 0.0
        %1590 = vmatpush1.msra.mxu0 0.0
        %1591 = vmatprep.subr.mxu0 0.0
        %1592 = vmatpush1.msra.mxu0 0.0
        %1593 = vmatprep.subr.mxu0 0.0
        %1594 = vmatpush1.msra.mxu0 0.0
        %1595 = vmatprep.subr.mxu0 0.0
        %1596 = vmatpush1.msra.mxu0 0.0
        %1597 = vmatprep.subr.mxu0 0.0
        %1598 = vmatpush1.msra.mxu0 0.0
        %1599 = vmatprep.subr.mxu0 0.0
        %1600 = vmatpush1.msra.mxu0 0.0
        %1601 = vmatprep.subr.mxu0 0.0
        %1602 = vmatpush1.msra.mxu0 0.0
        %1603 = vmatprep.subr.mxu0 0.0
        %1604 = vmatpush1.msra.mxu0 0.0
        %1605 = vmatprep.subr.mxu0 0.0
        %1606 = vmatpush1.msra.mxu0 0.0
        %1607 = vmatprep.mubr.f32.mxu0 0.0
        %1608 = vmatmul.mubr.f32.gmra.mrb[0].mxu0 %v1541
        %v1609 = vpop.f32.mrb[0].mxu0
        %v1610 = vadd.f32 %v1539, %v1609
        %v1611 = vpop.f32.mrb[0].mxu0
        %1612 = vdwg.mxu0
        %1613 = vst [vmem:[%s435] sm:$0x1] %v1610
        %v1614 = vld [vmem:[%s7] sm:$0xff]
        %v1615 = vld [vmem:[%s7 + $0x8] sm:$0xff]
        %v1616 = vld [vmem:[%s7 + $0x10] sm:$0xff]
        %v1617 = vld [vmem:[%s7 + $0x18] sm:$0xff]
        %v1618 = vld [vmem:[%s8] sm:$0xff]
        %v1619 = vld [vmem:[%s8 + $0x8] sm:$0xff]
        %v1620 = vld [vmem:[%s8 + $0x10] sm:$0xff]
        %v1621 = vld [vmem:[%s8 + $0x18] sm:$0xff]
        %1623 = vset.pattern.permute.xlu0 0
        %1624 = vperm.xlu0 %1623, %v1618
        %v1625 = vpop.permute.xlu0 %1624
        %1628 = vset.pattern.permute.xlu0 0
        %1629 = vperm.xlu0 %1628, %v1619
        %v1630 = vpop.permute.xlu0 %1629
        %1633 = vset.pattern.permute.xlu0 0
        %1634 = vperm.xlu0 %1633, %v1620
        %v1635 = vpop.permute.xlu0 %1634
        %1638 = vset.pattern.permute.xlu0 0
        %1639 = vperm.xlu0 %1638, %v1621
        %v1640 = vpop.permute.xlu0 %1639
        %v1643 = vsel %vm469, %v1614, 0
        %v1646 = vsel %vm469, %v1615, 0
        %v1649 = vsel %vm469, %v1616, 0
        %v1652 = vsel %vm469, %v1617, 0
        %1654 = vmatprep.subr.mxu0 0.0
        %1655 = vmatpush1.msra.mxu0 %v484
        %1656 = vmatprep.subr.mxu0 0.0
        %1657 = vmatpush1.msra.mxu0 0.0
        %1658 = vmatprep.subr.mxu0 0.0
        %1659 = vmatpush1.msra.mxu0 0.0
        %1660 = vmatprep.subr.mxu0 0.0
        %1661 = vmatpush1.msra.mxu0 0.0
        %1662 = vmatprep.subr.mxu0 0.0
        %1663 = vmatpush1.msra.mxu0 0.0
        %1664 = vmatprep.subr.mxu0 0.0
        %1665 = vmatpush1.msra.mxu0 0.0
        %1666 = vmatprep.subr.mxu0 0.0
        %1667 = vmatpush1.msra.mxu0 0.0
        %1668 = vmatprep.subr.mxu0 0.0
        %1669 = vmatpush1.msra.mxu0 0.0
        %1670 = vmatprep.subr.mxu0 0.0
        %1671 = vmatpush1.msra.mxu0 0.0
        %1672 = vmatprep.subr.mxu0 0.0
        %1673 = vmatpush1.msra.mxu0 0.0
        %1674 = vmatprep.subr.mxu0 0.0
        %1675 = vmatpush1.msra.mxu0 0.0
        %1676 = vmatprep.subr.mxu0 0.0
        %1677 = vmatpush1.msra.mxu0 0.0
        %1678 = vmatprep.subr.mxu0 0.0
        %1679 = vmatpush1.msra.mxu0 0.0
        %1680 = vmatprep.subr.mxu0 0.0
        %1681 = vmatpush1.msra.mxu0 0.0
        %1682 = vmatprep.subr.mxu0 0.0
        %1683 = vmatpush1.msra.mxu0 0.0
        %1684 = vmatprep.subr.mxu0 0.0
        %1685 = vmatpush1.msra.mxu0 0.0
        %1686 = vmatprep.subr.mxu0 0.0
        %1687 = vmatpush1.msra.mxu0 0.0
        %1688 = vmatprep.subr.mxu0 0.0
        %1689 = vmatpush1.msra.mxu0 0.0
        %1690 = vmatprep.subr.mxu0 0.0
        %1691 = vmatpush1.msra.mxu0 0.0
        %1692 = vmatprep.subr.mxu0 0.0
        %1693 = vmatpush1.msra.mxu0 0.0
        %1694 = vmatprep.subr.mxu0 0.0
        %1695 = vmatpush1.msra.mxu0 0.0
        %1696 = vmatprep.subr.mxu0 0.0
        %1697 = vmatpush1.msra.mxu0 0.0
        %1698 = vmatprep.subr.mxu0 0.0
        %1699 = vmatpush1.msra.mxu0 0.0
        %1700 = vmatprep.subr.mxu0 0.0
        %1701 = vmatpush1.msra.mxu0 0.0
        %1702 = vmatprep.subr.mxu0 0.0
        %1703 = vmatpush1.msra.mxu0 0.0
        %1704 = vmatprep.subr.mxu0 0.0
        %1705 = vmatpush1.msra.mxu0 0.0
        %1706 = vmatprep.subr.mxu0 0.0
        %1707 = vmatpush1.msra.mxu0 0.0
        %1708 = vmatprep.subr.mxu0 0.0
        %1709 = vmatpush1.msra.mxu0 0.0
        %1710 = vmatprep.subr.mxu0 0.0
        %1711 = vmatpush1.msra.mxu0 0.0
        %1712 = vmatprep.subr.mxu0 0.0
        %1713 = vmatpush1.msra.mxu0 0.0
        %1714 = vmatprep.subr.mxu0 0.0
        %1715 = vmatpush1.msra.mxu0 0.0
        %1716 = vmatprep.subr.mxu0 0.0
        %1717 = vmatpush1.msra.mxu0 0.0
        %1718 = vmatprep.mubr.f32.mxu0 0.0
        %1719 = vmatmul.mubr.f32.gmra.mrb[0].mxu0 %v1643
        %v1720 = vpop.f32.mrb[0].mxu0
        %v1721 = vadd.f32 %v1625, %v1720
        %v1722 = vpop.f32.mrb[0].mxu0
        %1723 = vmatprep.mubr.f32.mxu0 0.0
        %1724 = vmatmul.mubr.f32.gmra.mrb[0].mxu0 %v1646
        %v1725 = vpop.f32.mrb[0].mxu0
        %v1726 = vadd.f32 %v1630, %v1725
        %v1727 = vpop.f32.mrb[0].mxu0
        %1728 = vmatprep.mubr.f32.mxu0 0.0
        %1729 = vmatmul.mubr.f32.gmra.mrb[0].mxu0 %v1649
        %v1730 = vpop.f32.mrb[0].mxu0
        %v1731 = vadd.f32 %v1635, %v1730
        %v1732 = vpop.f32.mrb[0].mxu0
        %1733 = vmatprep.mubr.f32.mxu0 0.0
        %1734 = vmatmul.mubr.f32.gmra.mrb[0].mxu0 %v1652
        %v1735 = vpop.f32.mrb[0].mxu0
        %v1736 = vadd.f32 %v1640, %v1735
        %v1737 = vpop.f32.mrb[0].mxu0
        %1738 = vdwg.mxu0
        %v1739 = vand.u32 2147483647, %v1721
        %vm1740 = vcmp.le.f32.partialorder %v1739, 0.7853982
        %vm1741 = vcmp.lt.s32.totalorder %v1721, 0
        %v1742 = vand.u32 %v1721, 2139095040
        %v1743 = vshrl.u32 %v1742, 23
        %v1744 = vsub.s32 %v1743, 127
        %v1745 = vand.u32 2147483647, %v1721
        %v1746 = vand.u32 %v1745, 8388607
        %v1747 = vor.u32 %v1746, 8388608
        %v1748 = vsub.s32 0, %v1747
        %v1749 = vadd.s32 %v1744, 1
        %vm1750 = vcmp.gt.s32.totalorder %v1749, 0
        %v1751 = vsel %vm1750, %v1749, 0
        %v1752 = vshrl.u32 %v1751, 5
        %v1753 = vand.u32 %v1751, 31
        %v1754 = vsub.s32 32, %v1753
        %v1755 = vshrl.u32 683565275, %v1754
        %v1756 = vshll.u32 683565275, %v1753
        %v1757 = vshrl.u32 2475754826, %v1754
        %v1758 = vor.u32 %v1756, %v1757
        %v1759 = vshll.u32 2475754826, %v1753
        %v1760 = vshrl.u32 2131351028, %v1754
        %v1761 = vor.u32 %v1759, %v1760
        %v1762 = vshll.u32 2131351028, %v1753
        %v1763 = vshrl.u32 2102212464, %v1754
        %v1764 = vor.u32 %v1762, %v1763
        %v1765 = vshll.u32 2102212464, %v1753
        %v1766 = vshrl.u32 920167782, %v1754
        %v1767 = vor.u32 %v1765, %v1766
        %v1768 = vshll.u32 920167782, %v1753
        %v1769 = vshrl.u32 1326507024, %v1754
        %v1770 = vor.u32 %v1768, %v1769
        %vm1771 = vcmp.lt.s32.totalorder %v1752, 1
        %vm1772 = vcmp.lt.s32.totalorder %v1752, 2
        %vm1773 = vcmp.lt.s32.totalorder %v1752, 3
        %vm1774 = vcmp.lt.s32.totalorder %v1752, 4
        %v1775 = vsel %vm1771, %v1755, %v1758
        %v1776 = vsel %vm1774, %v1764, 2102212464
        %v1777 = vsel %vm1773, %v1761, %v1776
        %v1778 = vsel %vm1772, %v1775, %v1777
        %v1779 = vsel %vm1771, %v1758, %v1761
        %v1780 = vsel %vm1774, %v1767, 920167782
        %v1781 = vsel %vm1773, %v1764, %v1780
        %v1782 = vsel %vm1772, %v1779, %v1781
        %v1783 = vsel %vm1771, %v1761, %v1764
        %v1784 = vsel %vm1774, %v1770, 1326507024
        %v1785 = vsel %vm1773, %v1767, %v1784
        %v1786 = vsel %vm1772, %v1783, %v1785
        %v1787 = vshll.u32 %v1747, 8
        %v1788 = vmul.u32.u64.compose %v1787, %v1786
        %v1789 = vextract.low.u32 %v1788
        %v1790 = vextract.high.u32 %v1788
        %v1791 = vmul.u32.u64.compose %v1787, %v1782
        %v1792 = vextract.low.u32 %v1791
        %v1793 = vextract.high.u32 %v1791
        %v1794 = vmul.u32 %v1787, %v1778
        %v1795 = vadd.s32 %v1790, %v1792
        %vm1796 = vc.u32 %v1790, %v1792
        %v1797 = vadd.s32 %v1793, 1
        %v1798 = vsel %vm1796, %v1797, %v1793
        %v1799 = vadd.s32 %v1794, %v1798
        %v1800 = vadd.s32 %v1799, 536870912
        %v1801 = vshrl.u32 %v1800, 30
        %v1802 = vshll.u32 %v1801, 30
        %v1803 = vsub.s32 %v1799, %v1802
        %vm1804 = vcmp.lt.s32.totalorder %v1803, 0
        %v1805 = vsub.s32 0, %v1803
        %v1806 = vsel %vm1804, %v1805, %v1803
        %v1807 = vclz %v1806
        %v1808 = vsub.s32 %v1807, 2
        %vm1809 = vcmp.gt.s32.totalorder 0, %v1808
        %v1810 = vsel %vm1809, 0, %v1808
        %v1811 = vsub.s32 32, %v1810
        %v1812 = vshll.u32 %v1803, %v1810
        %v1813 = vshrl.u32 %v1795, %v1811
        %v1814 = vor.u32 %v1812, %v1813
        %v1815 = vsub.s32 4294967266, %v1810
        %v1816 = vadd.s32 %v1815, 127
        %v1817 = vshll.u32 %v1816, 23
        %v1818 = vor.u32 4788187, %v1817
        %v1819 = vand.u32 2147483647, %v1818
        %v1821 = vcvt.s32.f32 %v1814
        %v1822 = vmul.f32 %v1821, %v1819
        %v1823 = vxor.u32 %v1822, 2147483648
        %v1824 = vsel %vm1741, %v1823, %v1822
        %v1825 = vsub.s32 4, %v1801
        %v1826 = vsel %vm1741, %v1825, %v1801
        %v1827 = vsel %vm1740, %v1721, %v1824
        %v1828 = vsel %vm1740, 0, %v1826
        %v1829 = vcosq.f32.pop %v1827
        %v1830 = vsinq.f32.pop %v1827
        %vm1831 = vweird.f32 %v1721
        %v1832 = vadd.s32 %v1828, 3
        %v1833 = vand.u32 %v1832, 3
        %vm1834 = vcmp.lt.s32.totalorder %v1833, 2
        %vm1835 = vcmp.eq.s32.totalorder %v1833, 0
        %v1836 = vxor.u32 %v1830, 2147483648
        %v1837 = vsel %vm1835, %v1829, %v1836
        %vm1838 = vcmp.eq.s32.totalorder %v1833, 2
        %v1839 = vxor.u32 %v1829, 2147483648
        %v1840 = vsel %vm1838, %v1839, %v1830
        %v1841 = vsel %vm1834, %v1837, %v1840
        %v1842 = vsel %vm1831, nan, %v1841
        %v1843 = vand.u32 2147483647, %v1726
        %vm1844 = vcmp.le.f32.partialorder %v1843, 0.7853982
        %vm1845 = vcmp.lt.s32.totalorder %v1726, 0
        %v1846 = vand.u32 %v1726, 2139095040
        %v1847 = vshrl.u32 %v1846, 23
        %v1848 = vsub.s32 %v1847, 127
        %v1849 = vand.u32 2147483647, %v1726
        %v1850 = vand.u32 %v1849, 8388607
        %v1851 = vor.u32 %v1850, 8388608
        %v1852 = vsub.s32 0, %v1851
        %v1853 = vadd.s32 %v1848, 1
        %vm1854 = vcmp.gt.s32.totalorder %v1853, 0
        %v1855 = vsel %vm1854, %v1853, 0
        %v1856 = vshrl.u32 %v1855, 5
        %v1857 = vand.u32 %v1855, 31
        %v1858 = vsub.s32 32, %v1857
        %v1859 = vshrl.u32 683565275, %v1858
        %v1860 = vshll.u32 683565275, %v1857
        %v1861 = vshrl.u32 2475754826, %v1858
        %v1862 = vor.u32 %v1860, %v1861
        %v1863 = vshll.u32 2475754826, %v1857
        %v1864 = vshrl.u32 2131351028, %v1858
        %v1865 = vor.u32 %v1863, %v1864
        %v1866 = vshll.u32 2131351028, %v1857
        %v1867 = vshrl.u32 2102212464, %v1858
        %v1868 = vor.u32 %v1866, %v1867
        %v1869 = vshll.u32 2102212464, %v1857
        %v1870 = vshrl.u32 920167782, %v1858
        %v1871 = vor.u32 %v1869, %v1870
        %v1872 = vshll.u32 920167782, %v1857
        %v1873 = vshrl.u32 1326507024, %v1858
        %v1874 = vor.u32 %v1872, %v1873
        %vm1875 = vcmp.lt.s32.totalorder %v1856, 1
        %vm1876 = vcmp.lt.s32.totalorder %v1856, 2
        %vm1877 = vcmp.lt.s32.totalorder %v1856, 3
        %vm1878 = vcmp.lt.s32.totalorder %v1856, 4
        %v1879 = vsel %vm1875, %v1859, %v1862
        %v1880 = vsel %vm1878, %v1868, 2102212464
        %v1881 = vsel %vm1877, %v1865, %v1880
        %v1882 = vsel %vm1876, %v1879, %v1881
        %v1883 = vsel %vm1875, %v1862, %v1865
        %v1884 = vsel %vm1878, %v1871, 920167782
        %v1885 = vsel %vm1877, %v1868, %v1884
        %v1886 = vsel %vm1876, %v1883, %v1885
        %v1887 = vsel %vm1875, %v1865, %v1868
        %v1888 = vsel %vm1878, %v1874, 1326507024
        %v1889 = vsel %vm1877, %v1871, %v1888
        %v1890 = vsel %vm1876, %v1887, %v1889
        %v1891 = vshll.u32 %v1851, 8
        %v1892 = vmul.u32.u64.compose %v1891, %v1890
        %v1893 = vextract.low.u32 %v1892
        %v1894 = vextract.high.u32 %v1892
        %v1895 = vmul.u32.u64.compose %v1891, %v1886
        %v1896 = vextract.low.u32 %v1895
        %v1897 = vextract.high.u32 %v1895
        %v1898 = vmul.u32 %v1891, %v1882
        %v1899 = vadd.s32 %v1894, %v1896
        %vm1900 = vc.u32 %v1894, %v1896
        %v1901 = vadd.s32 %v1897, 1
        %v1902 = vsel %vm1900, %v1901, %v1897
        %v1903 = vadd.s32 %v1898, %v1902
        %v1904 = vadd.s32 %v1903, 536870912
        %v1905 = vshrl.u32 %v1904, 30
        %v1906 = vshll.u32 %v1905, 30
        %v1907 = vsub.s32 %v1903, %v1906
        %vm1908 = vcmp.lt.s32.totalorder %v1907, 0
        %v1909 = vsub.s32 0, %v1907
        %v1910 = vsel %vm1908, %v1909, %v1907
        %v1911 = vclz %v1910
        %v1912 = vsub.s32 %v1911, 2
        %vm1913 = vcmp.gt.s32.totalorder 0, %v1912
        %v1914 = vsel %vm1913, 0, %v1912
        %v1915 = vsub.s32 32, %v1914
        %v1916 = vshll.u32 %v1907, %v1914
        %v1917 = vshrl.u32 %v1899, %v1915
        %v1918 = vor.u32 %v1916, %v1917
        %v1919 = vsub.s32 4294967266, %v1914
        %v1920 = vadd.s32 %v1919, 127
        %v1921 = vshll.u32 %v1920, 23
        %v1922 = vor.u32 4788187, %v1921
        %v1923 = vand.u32 2147483647, %v1922
        %v1925 = vcvt.s32.f32 %v1918
        %v1926 = vmul.f32 %v1925, %v1923
        %v1927 = vxor.u32 %v1926, 2147483648
        %v1928 = vsel %vm1845, %v1927, %v1926
        %v1929 = vsub.s32 4, %v1905
        %v1930 = vsel %vm1845, %v1929, %v1905
        %v1931 = vsel %vm1844, %v1726, %v1928
        %v1932 = vsel %vm1844, 0, %v1930
        %v1933 = vcosq.f32.pop %v1931
        %v1934 = vsinq.f32.pop %v1931
        %vm1935 = vweird.f32 %v1726
        %v1936 = vadd.s32 %v1932, 3
        %v1937 = vand.u32 %v1936, 3
        %vm1938 = vcmp.lt.s32.totalorder %v1937, 2
        %vm1939 = vcmp.eq.s32.totalorder %v1937, 0
        %v1940 = vxor.u32 %v1934, 2147483648
        %v1941 = vsel %vm1939, %v1933, %v1940
        %vm1942 = vcmp.eq.s32.totalorder %v1937, 2
        %v1943 = vxor.u32 %v1933, 2147483648
        %v1944 = vsel %vm1942, %v1943, %v1934
        %v1945 = vsel %vm1938, %v1941, %v1944
        %v1946 = vsel %vm1935, nan, %v1945
        %v1947 = vand.u32 2147483647, %v1731
        %vm1948 = vcmp.le.f32.partialorder %v1947, 0.7853982
        %vm1949 = vcmp.lt.s32.totalorder %v1731, 0
        %v1950 = vand.u32 %v1731, 2139095040
        %v1951 = vshrl.u32 %v1950, 23
        %v1952 = vsub.s32 %v1951, 127
        %v1953 = vand.u32 2147483647, %v1731
        %v1954 = vand.u32 %v1953, 8388607
        %v1955 = vor.u32 %v1954, 8388608
        %v1956 = vsub.s32 0, %v1955
        %v1957 = vadd.s32 %v1952, 1
        %vm1958 = vcmp.gt.s32.totalorder %v1957, 0
        %v1959 = vsel %vm1958, %v1957, 0
        %v1960 = vshrl.u32 %v1959, 5
        %v1961 = vand.u32 %v1959, 31
        %v1962 = vsub.s32 32, %v1961
        %v1963 = vshrl.u32 683565275, %v1962
        %v1964 = vshll.u32 683565275, %v1961
        %v1965 = vshrl.u32 2475754826, %v1962
        %v1966 = vor.u32 %v1964, %v1965
        %v1967 = vshll.u32 2475754826, %v1961
        %v1968 = vshrl.u32 2131351028, %v1962
        %v1969 = vor.u32 %v1967, %v1968
        %v1970 = vshll.u32 2131351028, %v1961
        %v1971 = vshrl.u32 2102212464, %v1962
        %v1972 = vor.u32 %v1970, %v1971
        %v1973 = vshll.u32 2102212464, %v1961
        %v1974 = vshrl.u32 920167782, %v1962
        %v1975 = vor.u32 %v1973, %v1974
        %v1976 = vshll.u32 920167782, %v1961
        %v1977 = vshrl.u32 1326507024, %v1962
        %v1978 = vor.u32 %v1976, %v1977
        %vm1979 = vcmp.lt.s32.totalorder %v1960, 1
        %vm1980 = vcmp.lt.s32.totalorder %v1960, 2
        %vm1981 = vcmp.lt.s32.totalorder %v1960, 3
        %vm1982 = vcmp.lt.s32.totalorder %v1960, 4
        %v1983 = vsel %vm1979, %v1963, %v1966
        %v1984 = vsel %vm1982, %v1972, 2102212464
        %v1985 = vsel %vm1981, %v1969, %v1984
        %v1986 = vsel %vm1980, %v1983, %v1985
        %v1987 = vsel %vm1979, %v1966, %v1969
        %v1988 = vsel %vm1982, %v1975, 920167782
        %v1989 = vsel %vm1981, %v1972, %v1988
        %v1990 = vsel %vm1980, %v1987, %v1989
        %v1991 = vsel %vm1979, %v1969, %v1972
        %v1992 = vsel %vm1982, %v1978, 1326507024
        %v1993 = vsel %vm1981, %v1975, %v1992
        %v1994 = vsel %vm1980, %v1991, %v1993
        %v1995 = vshll.u32 %v1955, 8
        %v1996 = vmul.u32.u64.compose %v1995, %v1994
        %v1997 = vextract.low.u32 %v1996
        %v1998 = vextract.high.u32 %v1996
        %v1999 = vmul.u32.u64.compose %v1995, %v1990
        %v2000 = vextract.low.u32 %v1999
        %v2001 = vextract.high.u32 %v1999
        %v2002 = vmul.u32 %v1995, %v1986
        %v2003 = vadd.s32 %v1998, %v2000
        %vm2004 = vc.u32 %v1998, %v2000
        %v2005 = vadd.s32 %v2001, 1
        %v2006 = vsel %vm2004, %v2005, %v2001
        %v2007 = vadd.s32 %v2002, %v2006
        %v2008 = vadd.s32 %v2007, 536870912
        %v2009 = vshrl.u32 %v2008, 30
        %v2010 = vshll.u32 %v2009, 30
        %v2011 = vsub.s32 %v2007, %v2010
        %vm2012 = vcmp.lt.s32.totalorder %v2011, 0
        %v2013 = vsub.s32 0, %v2011
        %v2014 = vsel %vm2012, %v2013, %v2011
        %v2015 = vclz %v2014
        %v2016 = vsub.s32 %v2015, 2
        %vm2017 = vcmp.gt.s32.totalorder 0, %v2016
        %v2018 = vsel %vm2017, 0, %v2016
        %v2019 = vsub.s32 32, %v2018
        %v2020 = vshll.u32 %v2011, %v2018
        %v2021 = vshrl.u32 %v2003, %v2019
        %v2022 = vor.u32 %v2020, %v2021
        %v2023 = vsub.s32 4294967266, %v2018
        %v2024 = vadd.s32 %v2023, 127
        %v2025 = vshll.u32 %v2024, 23
        %v2026 = vor.u32 4788187, %v2025
        %v2027 = vand.u32 2147483647, %v2026
        %v2029 = vcvt.s32.f32 %v2022
        %v2030 = vmul.f32 %v2029, %v2027
        %v2031 = vxor.u32 %v2030, 2147483648
        %v2032 = vsel %vm1949, %v2031, %v2030
        %v2033 = vsub.s32 4, %v2009
        %v2034 = vsel %vm1949, %v2033, %v2009
        %v2035 = vsel %vm1948, %v1731, %v2032
        %v2036 = vsel %vm1948, 0, %v2034
        %v2037 = vcosq.f32.pop %v2035
        %v2038 = vsinq.f32.pop %v2035
        %vm2039 = vweird.f32 %v1731
        %v2040 = vadd.s32 %v2036, 3
        %v2041 = vand.u32 %v2040, 3
        %vm2042 = vcmp.lt.s32.totalorder %v2041, 2
        %vm2043 = vcmp.eq.s32.totalorder %v2041, 0
        %v2044 = vxor.u32 %v2038, 2147483648
        %v2045 = vsel %vm2043, %v2037, %v2044
        %vm2046 = vcmp.eq.s32.totalorder %v2041, 2
        %v2047 = vxor.u32 %v2037, 2147483648
        %v2048 = vsel %vm2046, %v2047, %v2038
        %v2049 = vsel %vm2042, %v2045, %v2048
        %v2050 = vsel %vm2039, nan, %v2049
        %v2051 = vand.u32 2147483647, %v1736
        %vm2052 = vcmp.le.f32.partialorder %v2051, 0.7853982
        %vm2053 = vcmp.lt.s32.totalorder %v1736, 0
        %v2054 = vand.u32 %v1736, 2139095040
        %v2055 = vshrl.u32 %v2054, 23
        %v2056 = vsub.s32 %v2055, 127
        %v2057 = vand.u32 2147483647, %v1736
        %v2058 = vand.u32 %v2057, 8388607
        %v2059 = vor.u32 %v2058, 8388608
        %v2060 = vsub.s32 0, %v2059
        %v2061 = vadd.s32 %v2056, 1
        %vm2062 = vcmp.gt.s32.totalorder %v2061, 0
        %v2063 = vsel %vm2062, %v2061, 0
        %v2064 = vshrl.u32 %v2063, 5
        %v2065 = vand.u32 %v2063, 31
        %v2066 = vsub.s32 32, %v2065
        %v2067 = vshrl.u32 683565275, %v2066
        %v2068 = vshll.u32 683565275, %v2065
        %v2069 = vshrl.u32 2475754826, %v2066
        %v2070 = vor.u32 %v2068, %v2069
        %v2071 = vshll.u32 2475754826, %v2065
        %v2072 = vshrl.u32 2131351028, %v2066
        %v2073 = vor.u32 %v2071, %v2072
        %v2074 = vshll.u32 2131351028, %v2065
        %v2075 = vshrl.u32 2102212464, %v2066
        %v2076 = vor.u32 %v2074, %v2075
        %v2077 = vshll.u32 2102212464, %v2065
        %v2078 = vshrl.u32 920167782, %v2066
        %v2079 = vor.u32 %v2077, %v2078
        %v2080 = vshll.u32 920167782, %v2065
        %v2081 = vshrl.u32 1326507024, %v2066
        %v2082 = vor.u32 %v2080, %v2081
        %vm2083 = vcmp.lt.s32.totalorder %v2064, 1
        %vm2084 = vcmp.lt.s32.totalorder %v2064, 2
        %vm2085 = vcmp.lt.s32.totalorder %v2064, 3
        %vm2086 = vcmp.lt.s32.totalorder %v2064, 4
        %v2087 = vsel %vm2083, %v2067, %v2070
        %v2088 = vsel %vm2086, %v2076, 2102212464
        %v2089 = vsel %vm2085, %v2073, %v2088
        %v2090 = vsel %vm2084, %v2087, %v2089
        %v2091 = vsel %vm2083, %v2070, %v2073
        %v2092 = vsel %vm2086, %v2079, 920167782
        %v2093 = vsel %vm2085, %v2076, %v2092
        %v2094 = vsel %vm2084, %v2091, %v2093
        %v2095 = vsel %vm2083, %v2073, %v2076
        %v2096 = vsel %vm2086, %v2082, 1326507024
        %v2097 = vsel %vm2085, %v2079, %v2096
        %v2098 = vsel %vm2084, %v2095, %v2097
        %v2099 = vshll.u32 %v2059, 8
        %v2100 = vmul.u32.u64.compose %v2099, %v2098
        %v2101 = vextract.low.u32 %v2100
        %v2102 = vextract.high.u32 %v2100
        %v2103 = vmul.u32.u64.compose %v2099, %v2094
        %v2104 = vextract.low.u32 %v2103
        %v2105 = vextract.high.u32 %v2103
        %v2106 = vmul.u32 %v2099, %v2090
        %v2107 = vadd.s32 %v2102, %v2104
        %vm2108 = vc.u32 %v2102, %v2104
        %v2109 = vadd.s32 %v2105, 1
        %v2110 = vsel %vm2108, %v2109, %v2105
        %v2111 = vadd.s32 %v2106, %v2110
        %v2112 = vadd.s32 %v2111, 536870912
        %v2113 = vshrl.u32 %v2112, 30
        %v2114 = vshll.u32 %v2113, 30
        %v2115 = vsub.s32 %v2111, %v2114
        %vm2116 = vcmp.lt.s32.totalorder %v2115, 0
        %v2117 = vsub.s32 0, %v2115
        %v2118 = vsel %vm2116, %v2117, %v2115
        %v2119 = vclz %v2118
        %v2120 = vsub.s32 %v2119, 2
        %vm2121 = vcmp.gt.s32.totalorder 0, %v2120
        %v2122 = vsel %vm2121, 0, %v2120
        %v2123 = vsub.s32 32, %v2122
        %v2124 = vshll.u32 %v2115, %v2122
        %v2125 = vshrl.u32 %v2107, %v2123
        %v2126 = vor.u32 %v2124, %v2125
        %v2127 = vsub.s32 4294967266, %v2122
        %v2128 = vadd.s32 %v2127, 127
        %v2129 = vshll.u32 %v2128, 23
        %v2130 = vor.u32 4788187, %v2129
        %v2131 = vand.u32 2147483647, %v2130
        %v2133 = vcvt.s32.f32 %v2126
        %v2134 = vmul.f32 %v2133, %v2131
        %v2135 = vxor.u32 %v2134, 2147483648
        %v2136 = vsel %vm2053, %v2135, %v2134
        %v2137 = vsub.s32 4, %v2113
        %v2138 = vsel %vm2053, %v2137, %v2113
        %v2139 = vsel %vm2052, %v1736, %v2136
        %v2140 = vsel %vm2052, 0, %v2138
        %v2141 = vcosq.f32.pop %v2139
        %v2142 = vsinq.f32.pop %v2139
        %vm2143 = vweird.f32 %v1736
        %v2144 = vadd.s32 %v2140, 3
        %v2145 = vand.u32 %v2144, 3
        %vm2146 = vcmp.lt.s32.totalorder %v2145, 2
        %vm2147 = vcmp.eq.s32.totalorder %v2145, 0
        %v2148 = vxor.u32 %v2142, 2147483648
        %v2149 = vsel %vm2147, %v2141, %v2148
        %vm2150 = vcmp.eq.s32.totalorder %v2145, 2
        %v2151 = vxor.u32 %v2141, 2147483648
        %v2152 = vsel %vm2150, %v2151, %v2142
        %v2153 = vsel %vm2146, %v2149, %v2152
        %v2154 = vsel %vm2143, nan, %v2153
        %v2155 = vld [vmem:[%s9] sm:$0xff]
        %v2156 = vld [vmem:[%s9 + $0x8] sm:$0xff]
        %v2157 = vld [vmem:[%s9 + $0x10] sm:$0xff]
        %v2158 = vld [vmem:[%s9 + $0x18] sm:$0xff]
        %v2159 = vld [vmem:[%s10] sm:$0xff]
        %v2160 = vld [vmem:[%s10 + $0x8] sm:$0xff]
        %v2161 = vld [vmem:[%s10 + $0x10] sm:$0xff]
        %v2162 = vld [vmem:[%s10 + $0x18] sm:$0xff]
        %2164 = vset.pattern.permute.xlu0 0
        %2165 = vperm.xlu0 %2164, %v2159
        %v2166 = vpop.permute.xlu0 %2165
        %2169 = vset.pattern.permute.xlu0 0
        %2170 = vperm.xlu0 %2169, %v2160
        %v2171 = vpop.permute.xlu0 %2170
        %2174 = vset.pattern.permute.xlu0 0
        %2175 = vperm.xlu0 %2174, %v2161
        %v2176 = vpop.permute.xlu0 %2175
        %2179 = vset.pattern.permute.xlu0 0
        %2180 = vperm.xlu0 %2179, %v2162
        %v2181 = vpop.permute.xlu0 %2180
        %v2184 = vsel %vm1015, %v2155, 0
        %v2187 = vsel %vm1015, %v2156, 0
        %v2190 = vsel %vm1015, %v2157, 0
        %v2193 = vsel %vm1015, %v2158, 0
        %2195 = vmatprep.subr.mxu0 0.0
        %2196 = vmatpush1.msra.mxu0 %v1842
        %2197 = vmatprep.subr.mxu0 0.0
        %2198 = vmatpush1.msra.mxu0 %v1946
        %2199 = vmatprep.subr.mxu0 0.0
        %2200 = vmatpush1.msra.mxu0 %v2050
        %2201 = vmatprep.subr.mxu0 0.0
        %2202 = vmatpush1.msra.mxu0 %v2154
        %2203 = vmatprep.subr.mxu0 0.0
        %2204 = vmatpush1.msra.mxu0 0.0
        %2205 = vmatprep.subr.mxu0 0.0
        %2206 = vmatpush1.msra.mxu0 0.0
        %2207 = vmatprep.subr.mxu0 0.0
        %2208 = vmatpush1.msra.mxu0 0.0
        %2209 = vmatprep.subr.mxu0 0.0
        %2210 = vmatpush1.msra.mxu0 0.0
        %2211 = vmatprep.subr.mxu0 0.0
        %2212 = vmatpush1.msra.mxu0 0.0
        %2213 = vmatprep.subr.mxu0 0.0
        %2214 = vmatpush1.msra.mxu0 0.0
        %2215 = vmatprep.subr.mxu0 0.0
        %2216 = vmatpush1.msra.mxu0 0.0
        %2217 = vmatprep.subr.mxu0 0.0
        %2218 = vmatpush1.msra.mxu0 0.0
        %2219 = vmatprep.subr.mxu0 0.0
        %2220 = vmatpush1.msra.mxu0 0.0
        %2221 = vmatprep.subr.mxu0 0.0
        %2222 = vmatpush1.msra.mxu0 0.0
        %2223 = vmatprep.subr.mxu0 0.0
        %2224 = vmatpush1.msra.mxu0 0.0
        %2225 = vmatprep.subr.mxu0 0.0
        %2226 = vmatpush1.msra.mxu0 0.0
        %2227 = vmatprep.subr.mxu0 0.0
        %2228 = vmatpush1.msra.mxu0 0.0
        %2229 = vmatprep.subr.mxu0 0.0
        %2230 = vmatpush1.msra.mxu0 0.0
        %2231 = vmatprep.subr.mxu0 0.0
        %2232 = vmatpush1.msra.mxu0 0.0
        %2233 = vmatprep.subr.mxu0 0.0
        %2234 = vmatpush1.msra.mxu0 0.0
        %2235 = vmatprep.subr.mxu0 0.0
        %2236 = vmatpush1.msra.mxu0 0.0
        %2237 = vmatprep.subr.mxu0 0.0
        %2238 = vmatpush1.msra.mxu0 0.0
        %2239 = vmatprep.subr.mxu0 0.0
        %2240 = vmatpush1.msra.mxu0 0.0
        %2241 = vmatprep.subr.mxu0 0.0
        %2242 = vmatpush1.msra.mxu0 0.0
        %2243 = vmatprep.subr.mxu0 0.0
        %2244 = vmatpush1.msra.mxu0 0.0
        %2245 = vmatprep.subr.mxu0 0.0
        %2246 = vmatpush1.msra.mxu0 0.0
        %2247 = vmatprep.subr.mxu0 0.0
        %2248 = vmatpush1.msra.mxu0 0.0
        %2249 = vmatprep.subr.mxu0 0.0
        %2250 = vmatpush1.msra.mxu0 0.0
        %2251 = vmatprep.subr.mxu0 0.0
        %2252 = vmatpush1.msra.mxu0 0.0
        %2253 = vmatprep.subr.mxu0 0.0
        %2254 = vmatpush1.msra.mxu0 0.0
        %2255 = vmatprep.subr.mxu0 0.0
        %2256 = vmatpush1.msra.mxu0 0.0
        %2257 = vmatprep.subr.mxu0 0.0
        %2258 = vmatpush1.msra.mxu0 0.0
        %2259 = vmatprep.mubr.f32.mxu0 0.0
        %2260 = vmatmul.mubr.f32.gmra.mrb[0].mxu0 %v2184
        %v2261 = vpop.f32.mrb[0].mxu0
        %v2262 = vadd.f32 %v2166, %v2261
        %v2263 = vpop.f32.mrb[0].mxu0
        %2264 = vmatprep.mubr.f32.mxu0 0.0
        %2265 = vmatmul.mubr.f32.gmra.mrb[0].mxu0 %v2187
        %v2266 = vpop.f32.mrb[0].mxu0
        %v2267 = vadd.f32 %v2171, %v2266
        %v2268 = vpop.f32.mrb[0].mxu0
        %2269 = vmatprep.mubr.f32.mxu0 0.0
        %2270 = vmatmul.mubr.f32.gmra.mrb[0].mxu0 %v2190
        %v2271 = vpop.f32.mrb[0].mxu0
        %v2272 = vadd.f32 %v2176, %v2271
        %v2273 = vpop.f32.mrb[0].mxu0
        %2274 = vmatprep.mubr.f32.mxu0 0.0
        %2275 = vmatmul.mubr.f32.gmra.mrb[0].mxu0 %v2193
        %v2276 = vpop.f32.mrb[0].mxu0
        %v2277 = vadd.f32 %v2181, %v2276
        %v2278 = vpop.f32.mrb[0].mxu0
        %2279 = vdwg.mxu0
        %v2280 = vand.u32 2147483647, %v2262
        %vm2281 = vcmp.le.f32.partialorder %v2280, 0.7853982
        %vm2282 = vcmp.lt.s32.totalorder %v2262, 0
        %v2283 = vand.u32 %v2262, 2139095040
        %v2284 = vshrl.u32 %v2283, 23
        %v2285 = vsub.s32 %v2284, 127
        %v2286 = vand.u32 2147483647, %v2262
        %v2287 = vand.u32 %v2286, 8388607
        %v2288 = vor.u32 %v2287, 8388608
        %v2289 = vsub.s32 0, %v2288
        %v2290 = vadd.s32 %v2285, 1
        %vm2291 = vcmp.gt.s32.totalorder %v2290, 0
        %v2292 = vsel %vm2291, %v2290, 0
        %v2293 = vshrl.u32 %v2292, 5
        %v2294 = vand.u32 %v2292, 31
        %v2295 = vsub.s32 32, %v2294
        %v2296 = vshrl.u32 683565275, %v2295
        %v2297 = vshll.u32 683565275, %v2294
        %v2298 = vshrl.u32 2475754826, %v2295
        %v2299 = vor.u32 %v2297, %v2298
        %v2300 = vshll.u32 2475754826, %v2294
        %v2301 = vshrl.u32 2131351028, %v2295
        %v2302 = vor.u32 %v2300, %v2301
        %v2303 = vshll.u32 2131351028, %v2294
        %v2304 = vshrl.u32 2102212464, %v2295
        %v2305 = vor.u32 %v2303, %v2304
        %v2306 = vshll.u32 2102212464, %v2294
        %v2307 = vshrl.u32 920167782, %v2295
        %v2308 = vor.u32 %v2306, %v2307
        %v2309 = vshll.u32 920167782, %v2294
        %v2310 = vshrl.u32 1326507024, %v2295
        %v2311 = vor.u32 %v2309, %v2310
        %vm2312 = vcmp.lt.s32.totalorder %v2293, 1
        %vm2313 = vcmp.lt.s32.totalorder %v2293, 2
        %vm2314 = vcmp.lt.s32.totalorder %v2293, 3
        %vm2315 = vcmp.lt.s32.totalorder %v2293, 4
        %v2316 = vsel %vm2312, %v2296, %v2299
        %v2317 = vsel %vm2315, %v2305, 2102212464
        %v2318 = vsel %vm2314, %v2302, %v2317
        %v2319 = vsel %vm2313, %v2316, %v2318
        %v2320 = vsel %vm2312, %v2299, %v2302
        %v2321 = vsel %vm2315, %v2308, 920167782
        %v2322 = vsel %vm2314, %v2305, %v2321
        %v2323 = vsel %vm2313, %v2320, %v2322
        %v2324 = vsel %vm2312, %v2302, %v2305
        %v2325 = vsel %vm2315, %v2311, 1326507024
        %v2326 = vsel %vm2314, %v2308, %v2325
        %v2327 = vsel %vm2313, %v2324, %v2326
        %v2328 = vshll.u32 %v2288, 8
        %v2329 = vmul.u32.u64.compose %v2328, %v2327
        %v2330 = vextract.low.u32 %v2329
        %v2331 = vextract.high.u32 %v2329
        %v2332 = vmul.u32.u64.compose %v2328, %v2323
        %v2333 = vextract.low.u32 %v2332
        %v2334 = vextract.high.u32 %v2332
        %v2335 = vmul.u32 %v2328, %v2319
        %v2336 = vadd.s32 %v2331, %v2333
        %vm2337 = vc.u32 %v2331, %v2333
        %v2338 = vadd.s32 %v2334, 1
        %v2339 = vsel %vm2337, %v2338, %v2334
        %v2340 = vadd.s32 %v2335, %v2339
        %v2341 = vadd.s32 %v2340, 536870912
        %v2342 = vshrl.u32 %v2341, 30
        %v2343 = vshll.u32 %v2342, 30
        %v2344 = vsub.s32 %v2340, %v2343
        %vm2345 = vcmp.lt.s32.totalorder %v2344, 0
        %v2346 = vsub.s32 0, %v2344
        %v2347 = vsel %vm2345, %v2346, %v2344
        %v2348 = vclz %v2347
        %v2349 = vsub.s32 %v2348, 2
        %vm2350 = vcmp.gt.s32.totalorder 0, %v2349
        %v2351 = vsel %vm2350, 0, %v2349
        %v2352 = vsub.s32 32, %v2351
        %v2353 = vshll.u32 %v2344, %v2351
        %v2354 = vshrl.u32 %v2336, %v2352
        %v2355 = vor.u32 %v2353, %v2354
        %v2356 = vsub.s32 4294967266, %v2351
        %v2357 = vadd.s32 %v2356, 127
        %v2358 = vshll.u32 %v2357, 23
        %v2359 = vor.u32 4788187, %v2358
        %v2360 = vand.u32 2147483647, %v2359
        %v2362 = vcvt.s32.f32 %v2355
        %v2363 = vmul.f32 %v2362, %v2360
        %v2364 = vxor.u32 %v2363, 2147483648
        %v2365 = vsel %vm2282, %v2364, %v2363
        %v2366 = vsub.s32 4, %v2342
        %v2367 = vsel %vm2282, %v2366, %v2342
        %v2368 = vsel %vm2281, %v2262, %v2365
        %v2369 = vsel %vm2281, 0, %v2367
        %v2370 = vcosq.f32.pop %v2368
        %v2371 = vsinq.f32.pop %v2368
        %vm2372 = vweird.f32 %v2262
        %v2373 = vadd.s32 %v2369, 3
        %v2374 = vand.u32 %v2373, 3
        %vm2375 = vcmp.lt.s32.totalorder %v2374, 2
        %vm2376 = vcmp.eq.s32.totalorder %v2374, 0
        %v2377 = vxor.u32 %v2371, 2147483648
        %v2378 = vsel %vm2376, %v2370, %v2377
        %vm2379 = vcmp.eq.s32.totalorder %v2374, 2
        %v2380 = vxor.u32 %v2370, 2147483648
        %v2381 = vsel %vm2379, %v2380, %v2371
        %v2382 = vsel %vm2375, %v2378, %v2381
        %v2383 = vsel %vm2372, nan, %v2382
        %v2384 = vand.u32 2147483647, %v2267
        %vm2385 = vcmp.le.f32.partialorder %v2384, 0.7853982
        %vm2386 = vcmp.lt.s32.totalorder %v2267, 0
        %v2387 = vand.u32 %v2267, 2139095040
        %v2388 = vshrl.u32 %v2387, 23
        %v2389 = vsub.s32 %v2388, 127
        %v2390 = vand.u32 2147483647, %v2267
        %v2391 = vand.u32 %v2390, 8388607
        %v2392 = vor.u32 %v2391, 8388608
        %v2393 = vsub.s32 0, %v2392
        %v2394 = vadd.s32 %v2389, 1
        %vm2395 = vcmp.gt.s32.totalorder %v2394, 0
        %v2396 = vsel %vm2395, %v2394, 0
        %v2397 = vshrl.u32 %v2396, 5
        %v2398 = vand.u32 %v2396, 31
        %v2399 = vsub.s32 32, %v2398
        %v2400 = vshrl.u32 683565275, %v2399
        %v2401 = vshll.u32 683565275, %v2398
        %v2402 = vshrl.u32 2475754826, %v2399
        %v2403 = vor.u32 %v2401, %v2402
        %v2404 = vshll.u32 2475754826, %v2398
        %v2405 = vshrl.u32 2131351028, %v2399
        %v2406 = vor.u32 %v2404, %v2405
        %v2407 = vshll.u32 2131351028, %v2398
        %v2408 = vshrl.u32 2102212464, %v2399
        %v2409 = vor.u32 %v2407, %v2408
        %v2410 = vshll.u32 2102212464, %v2398
        %v2411 = vshrl.u32 920167782, %v2399
        %v2412 = vor.u32 %v2410, %v2411
        %v2413 = vshll.u32 920167782, %v2398
        %v2414 = vshrl.u32 1326507024, %v2399
        %v2415 = vor.u32 %v2413, %v2414
        %vm2416 = vcmp.lt.s32.totalorder %v2397, 1
        %vm2417 = vcmp.lt.s32.totalorder %v2397, 2
        %vm2418 = vcmp.lt.s32.totalorder %v2397, 3
        %vm2419 = vcmp.lt.s32.totalorder %v2397, 4
        %v2420 = vsel %vm2416, %v2400, %v2403
        %v2421 = vsel %vm2419, %v2409, 2102212464
        %v2422 = vsel %vm2418, %v2406, %v2421
        %v2423 = vsel %vm2417, %v2420, %v2422
        %v2424 = vsel %vm2416, %v2403, %v2406
        %v2425 = vsel %vm2419, %v2412, 920167782
        %v2426 = vsel %vm2418, %v2409, %v2425
        %v2427 = vsel %vm2417, %v2424, %v2426
        %v2428 = vsel %vm2416, %v2406, %v2409
        %v2429 = vsel %vm2419, %v2415, 1326507024
        %v2430 = vsel %vm2418, %v2412, %v2429
        %v2431 = vsel %vm2417, %v2428, %v2430
        %v2432 = vshll.u32 %v2392, 8
        %v2433 = vmul.u32.u64.compose %v2432, %v2431
        %v2434 = vextract.low.u32 %v2433
        %v2435 = vextract.high.u32 %v2433
        %v2436 = vmul.u32.u64.compose %v2432, %v2427
        %v2437 = vextract.low.u32 %v2436
        %v2438 = vextract.high.u32 %v2436
        %v2439 = vmul.u32 %v2432, %v2423
        %v2440 = vadd.s32 %v2435, %v2437
        %vm2441 = vc.u32 %v2435, %v2437
        %v2442 = vadd.s32 %v2438, 1
        %v2443 = vsel %vm2441, %v2442, %v2438
        %v2444 = vadd.s32 %v2439, %v2443
        %v2445 = vadd.s32 %v2444, 536870912
        %v2446 = vshrl.u32 %v2445, 30
        %v2447 = vshll.u32 %v2446, 30
        %v2448 = vsub.s32 %v2444, %v2447
        %vm2449 = vcmp.lt.s32.totalorder %v2448, 0
        %v2450 = vsub.s32 0, %v2448
        %v2451 = vsel %vm2449, %v2450, %v2448
        %v2452 = vclz %v2451
        %v2453 = vsub.s32 %v2452, 2
        %vm2454 = vcmp.gt.s32.totalorder 0, %v2453
        %v2455 = vsel %vm2454, 0, %v2453
        %v2456 = vsub.s32 32, %v2455
        %v2457 = vshll.u32 %v2448, %v2455
        %v2458 = vshrl.u32 %v2440, %v2456
        %v2459 = vor.u32 %v2457, %v2458
        %v2460 = vsub.s32 4294967266, %v2455
        %v2461 = vadd.s32 %v2460, 127
        %v2462 = vshll.u32 %v2461, 23
        %v2463 = vor.u32 4788187, %v2462
        %v2464 = vand.u32 2147483647, %v2463
        %v2466 = vcvt.s32.f32 %v2459
        %v2467 = vmul.f32 %v2466, %v2464
        %v2468 = vxor.u32 %v2467, 2147483648
        %v2469 = vsel %vm2386, %v2468, %v2467
        %v2470 = vsub.s32 4, %v2446
        %v2471 = vsel %vm2386, %v2470, %v2446
        %v2472 = vsel %vm2385, %v2267, %v2469
        %v2473 = vsel %vm2385, 0, %v2471
        %v2474 = vcosq.f32.pop %v2472
        %v2475 = vsinq.f32.pop %v2472
        %vm2476 = vweird.f32 %v2267
        %v2477 = vadd.s32 %v2473, 3
        %v2478 = vand.u32 %v2477, 3
        %vm2479 = vcmp.lt.s32.totalorder %v2478, 2
        %vm2480 = vcmp.eq.s32.totalorder %v2478, 0
        %v2481 = vxor.u32 %v2475, 2147483648
        %v2482 = vsel %vm2480, %v2474, %v2481
        %vm2483 = vcmp.eq.s32.totalorder %v2478, 2
        %v2484 = vxor.u32 %v2474, 2147483648
        %v2485 = vsel %vm2483, %v2484, %v2475
        %v2486 = vsel %vm2479, %v2482, %v2485
        %v2487 = vsel %vm2476, nan, %v2486
        %v2488 = vand.u32 2147483647, %v2272
        %vm2489 = vcmp.le.f32.partialorder %v2488, 0.7853982
        %vm2490 = vcmp.lt.s32.totalorder %v2272, 0
        %v2491 = vand.u32 %v2272, 2139095040
        %v2492 = vshrl.u32 %v2491, 23
        %v2493 = vsub.s32 %v2492, 127
        %v2494 = vand.u32 2147483647, %v2272
        %v2495 = vand.u32 %v2494, 8388607
        %v2496 = vor.u32 %v2495, 8388608
        %v2497 = vsub.s32 0, %v2496
        %v2498 = vadd.s32 %v2493, 1
        %vm2499 = vcmp.gt.s32.totalorder %v2498, 0
        %v2500 = vsel %vm2499, %v2498, 0
        %v2501 = vshrl.u32 %v2500, 5
        %v2502 = vand.u32 %v2500, 31
        %v2503 = vsub.s32 32, %v2502
        %v2504 = vshrl.u32 683565275, %v2503
        %v2505 = vshll.u32 683565275, %v2502
        %v2506 = vshrl.u32 2475754826, %v2503
        %v2507 = vor.u32 %v2505, %v2506
        %v2508 = vshll.u32 2475754826, %v2502
        %v2509 = vshrl.u32 2131351028, %v2503
        %v2510 = vor.u32 %v2508, %v2509
        %v2511 = vshll.u32 2131351028, %v2502
        %v2512 = vshrl.u32 2102212464, %v2503
        %v2513 = vor.u32 %v2511, %v2512
        %v2514 = vshll.u32 2102212464, %v2502
        %v2515 = vshrl.u32 920167782, %v2503
        %v2516 = vor.u32 %v2514, %v2515
        %v2517 = vshll.u32 920167782, %v2502
        %v2518 = vshrl.u32 1326507024, %v2503
        %v2519 = vor.u32 %v2517, %v2518
        %vm2520 = vcmp.lt.s32.totalorder %v2501, 1
        %vm2521 = vcmp.lt.s32.totalorder %v2501, 2
        %vm2522 = vcmp.lt.s32.totalorder %v2501, 3
        %vm2523 = vcmp.lt.s32.totalorder %v2501, 4
        %v2524 = vsel %vm2520, %v2504, %v2507
        %v2525 = vsel %vm2523, %v2513, 2102212464
        %v2526 = vsel %vm2522, %v2510, %v2525
        %v2527 = vsel %vm2521, %v2524, %v2526
        %v2528 = vsel %vm2520, %v2507, %v2510
        %v2529 = vsel %vm2523, %v2516, 920167782
        %v2530 = vsel %vm2522, %v2513, %v2529
        %v2531 = vsel %vm2521, %v2528, %v2530
        %v2532 = vsel %vm2520, %v2510, %v2513
        %v2533 = vsel %vm2523, %v2519, 1326507024
        %v2534 = vsel %vm2522, %v2516, %v2533
        %v2535 = vsel %vm2521, %v2532, %v2534
        %v2536 = vshll.u32 %v2496, 8
        %v2537 = vmul.u32.u64.compose %v2536, %v2535
        %v2538 = vextract.low.u32 %v2537
        %v2539 = vextract.high.u32 %v2537
        %v2540 = vmul.u32.u64.compose %v2536, %v2531
        %v2541 = vextract.low.u32 %v2540
        %v2542 = vextract.high.u32 %v2540
        %v2543 = vmul.u32 %v2536, %v2527
        %v2544 = vadd.s32 %v2539, %v2541
        %vm2545 = vc.u32 %v2539, %v2541
        %v2546 = vadd.s32 %v2542, 1
        %v2547 = vsel %vm2545, %v2546, %v2542
        %v2548 = vadd.s32 %v2543, %v2547
        %v2549 = vadd.s32 %v2548, 536870912
        %v2550 = vshrl.u32 %v2549, 30
        %v2551 = vshll.u32 %v2550, 30
        %v2552 = vsub.s32 %v2548, %v2551
        %vm2553 = vcmp.lt.s32.totalorder %v2552, 0
        %v2554 = vsub.s32 0, %v2552
        %v2555 = vsel %vm2553, %v2554, %v2552
        %v2556 = vclz %v2555
        %v2557 = vsub.s32 %v2556, 2
        %vm2558 = vcmp.gt.s32.totalorder 0, %v2557
        %v2559 = vsel %vm2558, 0, %v2557
        %v2560 = vsub.s32 32, %v2559
        %v2561 = vshll.u32 %v2552, %v2559
        %v2562 = vshrl.u32 %v2544, %v2560
        %v2563 = vor.u32 %v2561, %v2562
        %v2564 = vsub.s32 4294967266, %v2559
        %v2565 = vadd.s32 %v2564, 127
        %v2566 = vshll.u32 %v2565, 23
        %v2567 = vor.u32 4788187, %v2566
        %v2568 = vand.u32 2147483647, %v2567
        %v2570 = vcvt.s32.f32 %v2563
        %v2571 = vmul.f32 %v2570, %v2568
        %v2572 = vxor.u32 %v2571, 2147483648
        %v2573 = vsel %vm2490, %v2572, %v2571
        %v2574 = vsub.s32 4, %v2550
        %v2575 = vsel %vm2490, %v2574, %v2550
        %v2576 = vsel %vm2489, %v2272, %v2573
        %v2577 = vsel %vm2489, 0, %v2575
        %v2578 = vcosq.f32.pop %v2576
        %v2579 = vsinq.f32.pop %v2576
        %vm2580 = vweird.f32 %v2272
        %v2581 = vadd.s32 %v2577, 3
        %v2582 = vand.u32 %v2581, 3
        %vm2583 = vcmp.lt.s32.totalorder %v2582, 2
        %vm2584 = vcmp.eq.s32.totalorder %v2582, 0
        %v2585 = vxor.u32 %v2579, 2147483648
        %v2586 = vsel %vm2584, %v2578, %v2585
        %vm2587 = vcmp.eq.s32.totalorder %v2582, 2
        %v2588 = vxor.u32 %v2578, 2147483648
        %v2589 = vsel %vm2587, %v2588, %v2579
        %v2590 = vsel %vm2583, %v2586, %v2589
        %v2591 = vsel %vm2580, nan, %v2590
        %v2592 = vand.u32 2147483647, %v2277
        %vm2593 = vcmp.le.f32.partialorder %v2592, 0.7853982
        %vm2594 = vcmp.lt.s32.totalorder %v2277, 0
        %v2595 = vand.u32 %v2277, 2139095040
        %v2596 = vshrl.u32 %v2595, 23
        %v2597 = vsub.s32 %v2596, 127
        %v2598 = vand.u32 2147483647, %v2277
        %v2599 = vand.u32 %v2598, 8388607
        %v2600 = vor.u32 %v2599, 8388608
        %v2601 = vsub.s32 0, %v2600
        %v2602 = vadd.s32 %v2597, 1
        %vm2603 = vcmp.gt.s32.totalorder %v2602, 0
        %v2604 = vsel %vm2603, %v2602, 0
        %v2605 = vshrl.u32 %v2604, 5
        %v2606 = vand.u32 %v2604, 31
        %v2607 = vsub.s32 32, %v2606
        %v2608 = vshrl.u32 683565275, %v2607
        %v2609 = vshll.u32 683565275, %v2606
        %v2610 = vshrl.u32 2475754826, %v2607
        %v2611 = vor.u32 %v2609, %v2610
        %v2612 = vshll.u32 2475754826, %v2606
        %v2613 = vshrl.u32 2131351028, %v2607
        %v2614 = vor.u32 %v2612, %v2613
        %v2615 = vshll.u32 2131351028, %v2606
        %v2616 = vshrl.u32 2102212464, %v2607
        %v2617 = vor.u32 %v2615, %v2616
        %v2618 = vshll.u32 2102212464, %v2606
        %v2619 = vshrl.u32 920167782, %v2607
        %v2620 = vor.u32 %v2618, %v2619
        %v2621 = vshll.u32 920167782, %v2606
        %v2622 = vshrl.u32 1326507024, %v2607
        %v2623 = vor.u32 %v2621, %v2622
        %vm2624 = vcmp.lt.s32.totalorder %v2605, 1
        %vm2625 = vcmp.lt.s32.totalorder %v2605, 2
        %vm2626 = vcmp.lt.s32.totalorder %v2605, 3
        %vm2627 = vcmp.lt.s32.totalorder %v2605, 4
        %v2628 = vsel %vm2624, %v2608, %v2611
        %v2629 = vsel %vm2627, %v2617, 2102212464
        %v2630 = vsel %vm2626, %v2614, %v2629
        %v2631 = vsel %vm2625, %v2628, %v2630
        %v2632 = vsel %vm2624, %v2611, %v2614
        %v2633 = vsel %vm2627, %v2620, 920167782
        %v2634 = vsel %vm2626, %v2617, %v2633
        %v2635 = vsel %vm2625, %v2632, %v2634
        %v2636 = vsel %vm2624, %v2614, %v2617
        %v2637 = vsel %vm2627, %v2623, 1326507024
        %v2638 = vsel %vm2626, %v2620, %v2637
        %v2639 = vsel %vm2625, %v2636, %v2638
        %v2640 = vshll.u32 %v2600, 8
        %v2641 = vmul.u32.u64.compose %v2640, %v2639
        %v2642 = vextract.low.u32 %v2641
        %v2643 = vextract.high.u32 %v2641
        %v2644 = vmul.u32.u64.compose %v2640, %v2635
        %v2645 = vextract.low.u32 %v2644
        %v2646 = vextract.high.u32 %v2644
        %v2647 = vmul.u32 %v2640, %v2631
        %v2648 = vadd.s32 %v2643, %v2645
        %vm2649 = vc.u32 %v2643, %v2645
        %v2650 = vadd.s32 %v2646, 1
        %v2651 = vsel %vm2649, %v2650, %v2646
        %v2652 = vadd.s32 %v2647, %v2651
        %v2653 = vadd.s32 %v2652, 536870912
        %v2654 = vshrl.u32 %v2653, 30
        %v2655 = vshll.u32 %v2654, 30
        %v2656 = vsub.s32 %v2652, %v2655
        %vm2657 = vcmp.lt.s32.totalorder %v2656, 0
        %v2658 = vsub.s32 0, %v2656
        %v2659 = vsel %vm2657, %v2658, %v2656
        %v2660 = vclz %v2659
        %v2661 = vsub.s32 %v2660, 2
        %vm2662 = vcmp.gt.s32.totalorder 0, %v2661
        %v2663 = vsel %vm2662, 0, %v2661
        %v2664 = vsub.s32 32, %v2663
        %v2665 = vshll.u32 %v2656, %v2663
        %v2666 = vshrl.u32 %v2648, %v2664
        %v2667 = vor.u32 %v2665, %v2666
        %v2668 = vsub.s32 4294967266, %v2663
        %v2669 = vadd.s32 %v2668, 127
        %v2670 = vshll.u32 %v2669, 23
        %v2671 = vor.u32 4788187, %v2670
        %v2672 = vand.u32 2147483647, %v2671
        %v2674 = vcvt.s32.f32 %v2667
        %v2675 = vmul.f32 %v2674, %v2672
        %v2676 = vxor.u32 %v2675, 2147483648
        %v2677 = vsel %vm2594, %v2676, %v2675
        %v2678 = vsub.s32 4, %v2654
        %v2679 = vsel %vm2594, %v2678, %v2654
        %v2680 = vsel %vm2593, %v2277, %v2677
        %v2681 = vsel %vm2593, 0, %v2679
        %v2682 = vcosq.f32.pop %v2680
        %v2683 = vsinq.f32.pop %v2680
        %vm2684 = vweird.f32 %v2277
        %v2685 = vadd.s32 %v2681, 3
        %v2686 = vand.u32 %v2685, 3
        %vm2687 = vcmp.lt.s32.totalorder %v2686, 2
        %vm2688 = vcmp.eq.s32.totalorder %v2686, 0
        %v2689 = vxor.u32 %v2683, 2147483648
        %v2690 = vsel %vm2688, %v2682, %v2689
        %vm2691 = vcmp.eq.s32.totalorder %v2686, 2
        %v2692 = vxor.u32 %v2682, 2147483648
        %v2693 = vsel %vm2691, %v2692, %v2683
        %v2694 = vsel %vm2687, %v2690, %v2693
        %v2695 = vsel %vm2684, nan, %v2694
        %v2696 = vld [vmem:[%s11] sm:$0x1]
        %v2697 = vld [vmem:[#allocation3] sm:$0x1]
        %2699 = vset.pattern.permute.xlu0 0
        %2700 = vperm.xlu0 %2699, %v2697
        %v2701 = vpop.permute.xlu0 %2700
        %v2703 = vlaneseq
        %v2704 = vshrl.u32 %v2703, 7
        %v2705 = vsub.s32 0, %v2704
        %v2706 = vrot.slane %v2701, %v2705
        %v2708 = vsel %vm1015, %v2696, 0
        %2710 = vmatprep.subr.mxu0 0.0
        %2711 = vmatpush1.msra.mxu0 %v2383
        %2712 = vmatprep.subr.mxu0 0.0
        %2713 = vmatpush1.msra.mxu0 %v2487
        %2714 = vmatprep.subr.mxu0 0.0
        %2715 = vmatpush1.msra.mxu0 %v2591
        %2716 = vmatprep.subr.mxu0 0.0
        %2717 = vmatpush1.msra.mxu0 %v2695
        %2718 = vmatprep.subr.mxu0 0.0
        %2719 = vmatpush1.msra.mxu0 0.0
        %2720 = vmatprep.subr.mxu0 0.0
        %2721 = vmatpush1.msra.mxu0 0.0
        %2722 = vmatprep.subr.mxu0 0.0
        %2723 = vmatpush1.msra.mxu0 0.0
        %2724 = vmatprep.subr.mxu0 0.0
        %2725 = vmatpush1.msra.mxu0 0.0
        %2726 = vmatprep.subr.mxu0 0.0
        %2727 = vmatpush1.msra.mxu0 0.0
        %2728 = vmatprep.subr.mxu0 0.0
        %2729 = vmatpush1.msra.mxu0 0.0
        %2730 = vmatprep.subr.mxu0 0.0
        %2731 = vmatpush1.msra.mxu0 0.0
        %2732 = vmatprep.subr.mxu0 0.0
        %2733 = vmatpush1.msra.mxu0 0.0
        %2734 = vmatprep.subr.mxu0 0.0
        %2735 = vmatpush1.msra.mxu0 0.0
        %2736 = vmatprep.subr.mxu0 0.0
        %2737 = vmatpush1.msra.mxu0 0.0
        %2738 = vmatprep.subr.mxu0 0.0
        %2739 = vmatpush1.msra.mxu0 0.0
        %2740 = vmatprep.subr.mxu0 0.0
        %2741 = vmatpush1.msra.mxu0 0.0
        %2742 = vmatprep.subr.mxu0 0.0
        %2743 = vmatpush1.msra.mxu0 0.0
        %2744 = vmatprep.subr.mxu0 0.0
        %2745 = vmatpush1.msra.mxu0 0.0
        %2746 = vmatprep.subr.mxu0 0.0
        %2747 = vmatpush1.msra.mxu0 0.0
        %2748 = vmatprep.subr.mxu0 0.0
        %2749 = vmatpush1.msra.mxu0 0.0
        %2750 = vmatprep.subr.mxu0 0.0
        %2751 = vmatpush1.msra.mxu0 0.0
        %2752 = vmatprep.subr.mxu0 0.0
        %2753 = vmatpush1.msra.mxu0 0.0
        %2754 = vmatprep.subr.mxu0 0.0
        %2755 = vmatpush1.msra.mxu0 0.0
        %2756 = vmatprep.subr.mxu0 0.0
        %2757 = vmatpush1.msra.mxu0 0.0
        %2758 = vmatprep.subr.mxu0 0.0
        %2759 = vmatpush1.msra.mxu0 0.0
        %2760 = vmatprep.subr.mxu0 0.0
        %2761 = vmatpush1.msra.mxu0 0.0
        %2762 = vmatprep.subr.mxu0 0.0
        %2763 = vmatpush1.msra.mxu0 0.0
        %2764 = vmatprep.subr.mxu0 0.0
        %2765 = vmatpush1.msra.mxu0 0.0
        %2766 = vmatprep.subr.mxu0 0.0
        %2767 = vmatpush1.msra.mxu0 0.0
        %2768 = vmatprep.subr.mxu0 0.0
        %2769 = vmatpush1.msra.mxu0 0.0
        %2770 = vmatprep.subr.mxu0 0.0
        %2771 = vmatpush1.msra.mxu0 0.0
        %2772 = vmatprep.subr.mxu0 0.0
        %2773 = vmatpush1.msra.mxu0 0.0
        %2774 = vmatprep.mubr.f32.mxu0 0.0
        %2775 = vmatmul.mubr.f32.gmra.mrb[0].mxu0 %v2708
        %v2776 = vpop.f32.mrb[0].mxu0
        %v2777 = vadd.f32 %v2706, %v2776
        %v2778 = vpop.f32.mrb[0].mxu0
        %2779 = vdwg.mxu0
        %2780 = vst [vmem:[%s435 + $0x1] sm:$0x1] %v2777
        %s2781 = sand.u32 %s317, 1
        %s2782 = scalar_lea.sflag [#allocation5], %s2781
        %s2783 = sand.u32 %s317, 1
        %s2784 = smul.addr %s2783, 2
        %s2785 = scalar_lea.vmem [#allocation4], %s2784
        // Predicated region
        $region73: #{tpu_custom_call.1} parent=71 // pred_check
          %p2786 = pneg %p327
        $region74: #{tpu_custom_call.1} parent=71 // pred_check_branch
          %2788 = sbr.rel (%p2786) target = $region76
        $region75: #{tpu_custom_call.1} parent=71 // pred_region
          %s2790 = ssub.s32 32, 32
          %2791 = vsyncadd %s2782, %s2790
          %s2792 = smul.addr %s31, 32
          %s2793 = scalar_lea.hbm %s13, %s2792
          %s2795 = sshll.u32 %s2785, 4
          %s2796 = int_to_ptr.vmem [resolvable:$true] %s2795
          %2798 = dma.vmem_to_hbm [thread:$0]  %s2796, 32, %s2793, %s2782
        $region76: #{tpu_custom_call.1} parent=71 // pred_fallthru
          _
      $region72: #{tpu_custom_call.1} parent=5 // pred_fallthru
        _
      %p2799 = scmp.le.s32.totalorder 2, %s26
      // Predicated region
      $region77: #{tpu_custom_call.1} parent=5 // pred_check
        %p2800 = pneg %p2799
      $region78: #{tpu_custom_call.1} parent=5 // pred_check_branch
        %2802 = sbr.rel (%p2800) target = $region80
      $region79: #{tpu_custom_call.1} parent=5 // pred_region
        %s2803 = ssub.s32 %s26, 2
        // Predicated region
        $region81: #{tpu_custom_call.1} parent=79 // pred_check
          %p2804 = pneg %p333
        $region82: #{tpu_custom_call.1} parent=79 // pred_check_branch
          %2806 = sbr.rel (%p2804) target = $region84
        $region83: #{tpu_custom_call.1} parent=79 // pred_region
          %s2807 = sand.u32 %s318, 1
          %s2808 = scalar_lea.sflag [#allocation5], %s2807
          %s2809 = sand.u32 %s318, 1
          %s2810 = smul.addr %s2809, 2
          %s2811 = scalar_lea.vmem [#allocation4], %s2810
          %2812 = dma.done %s2808, 32
        $region84: #{tpu_custom_call.1} parent=79 // pred_fallthru
          _
      $region80: #{tpu_custom_call.1} parent=5 // pred_fallthru
        _
    $region6: #{tpu_custom_call.1} parent=1 // loop_footer
      %s30 = sadd.s32 1, %s26
    $region7: #{tpu_custom_call.1} parent=1 // loop_footer_branch
      %25 = sbr.rel target = $region3
    $region8: #{tpu_custom_call.1} parent=1 // loop_exit
      _
    %2813 = vsyncpa [#allocation5], 1
    %s2814 = scalar_lea.sflag [#allocation5], 1
    %2815 = vsyncpa %s2814, 1

</llo_original>
